<compile_context>
chip_gen: v6e
topology: v6e:2x2x1
jax: 0.10.0
libtpu: 0.0.40
codegen_flags: <defaults>
</compile_context>

<pallas_src>
import math
import numpy as np
import jax
import jax.numpy as jnp
from jax.experimental import pallas as pl
from jax.experimental.pallas import tpu as pltpu


# ----------------------------------------------------------------------------
# numpy "glue" from the original module (host-side position features)
# ----------------------------------------------------------------------------
def extract_position_matrix(bbox, nongt_dim):
    start, end = np.split(bbox, 2, axis=1)
    center = 0.5 * (start + end)
    length = (end - start).astype("float32")
    delta_center = np.divide(center - np.transpose(center), length)
    delta_center = np.maximum(np.abs(delta_center), 0.001)
    delta_length = np.divide(np.transpose(length), length)
    delta_length = np.log(delta_length)
    delta_center = np.expand_dims(delta_center, 2)
    delta_length = np.expand_dims(delta_length, 2)
    return np.concatenate((delta_center, delta_length), axis=2)


def extract_position_embedding(position_mat, feat_dim, wave_length=10000):
    num_rois, nongt_dim, _ = position_mat.shape
    feat_range = np.arange(0, feat_dim / 4)
    dim_mat = np.power(np.full((1,), wave_length), (4.0 / feat_dim) * feat_range)
    dim_mat = np.reshape(dim_mat, (1, 1, 1, -1))            # positional shape (numpy>=2)
    position_mat = np.expand_dims(100.0 * position_mat, axis=3)
    div_mat = np.divide(position_mat, dim_mat)
    sin_mat = np.sin(div_mat)
    cos_mat = np.cos(div_mat)
    embedding = np.concatenate((sin_mat, cos_mat), axis=3)
    return np.reshape(embedding, (num_rois, nongt_dim, feat_dim))


# ----------------------------------------------------------------------------
# Fused kernel: event_emb + q/k projection + position MLP + fST0 gating +
#               softmax + attend-over-values + grouped 1x1-conv projection.
# Everything lives in VMEM for the whole call; output is lane-dense [N, G*do_g].
# ----------------------------------------------------------------------------
def _fused_kernel(feats_ref, pos_ref,
                  w_emb_ref, b_emb_ref,
                  w1_ref, b1_ref, w2_ref, b2_ref,
                  wqk_ref, bqk_ref,
                  wout_ref, bout_ref,
                  repi_ref, repit_ref, repj_ref,
                  selg_ref, colrep_ref,
                  o_ref):
    f32 = jnp.float32
    E = wqk_ref.shape[0]

    # event_emb: soi doubles as the attention value tensor v
    soi = jnp.dot(feats_ref[...], w_emb_ref[...],
                  preferred_element_type=f32) + b_emb_ref[...]                  # [N, E]

    # fused query/key projection (wq/bq pre-scaled by 1/sqrt(dg) host-side)
    qk = jnp.dot(soi, wqk_ref[...], preferred_element_type=f32) + bqk_ref[...]  # [N, 2E]
    q = qk[:, :E]
    k = qk[:, E:]

    # pairwise position MLP (fc1 + tanh + fc2), flat over (i, j) pairs
    pf1 = jnp.tanh(jnp.dot(pos_ref[...], w1_ref[...],
                           preferred_element_type=f32) + b1_ref[...])           # [NN, E]
    aw = jnp.dot(pf1, w2_ref[...], preferred_element_type=f32) + b2_ref[...]    # [NN, G]

    # per-(pair, group) scaled q.k scores, same flat [NN, G] layout as aw
    q_rep = jnp.dot(repi_ref[...], q, preferred_element_type=f32)               # [NN, E]  q of query i
    k_rep = jnp.dot(repj_ref[...], k, preferred_element_type=f32)               # [NN, E]  k of key j
    s_all = jnp.dot(q_rep * k_rep, selg_ref[...], preferred_element_type=f32)   # [NN, G]

    # fST0 multiplicative gating + softmax over keys j within each query block
    w = aw * s_all
    w = w - jnp.max(w, axis=0, keepdims=True)   # constant per (i,g) block -> softmax-invariant
    e = jnp.exp(w)
    denom = jnp.dot(repit_ref[...], e, preferred_element_type=f32)              # [N, G]  sum over j
    denom_rep = jnp.dot(repi_ref[...], denom, preferred_element_type=f32)       # [NN, G]
    p = e * pl.reciprocal(denom_rep)                                            # [NN, G]
    # TODO(synk): train-mode Dropout(0.3) on p is not reproduced (inference identity).

    # attend over values and apply the grouped 1x1-conv output projection,
    # emitted directly in lane-dense [N, G*do_g] layout.
    p_cols = jnp.dot(p, colrep_ref[...], preferred_element_type=f32)            # [NN, G*do_g]
    vw = jnp.dot(soi, wout_ref[...], preferred_element_type=f32)                # [N,  G*do_g]
    vw_rep = jnp.dot(repj_ref[...], vw, preferred_element_type=f32)             # [NN, G*do_g]
    o_ref[...] = (jnp.dot(repit_ref[...], p_cols * vw_rep,
                          preferred_element_type=f32) + bout_ref[...])


def ma_attention8_forward(feats, pos_flat, params, n_head):
    N = feats.shape[0]
    E = params["w_emb"].shape[1]
    G = n_head
    dg = E // G
    do_g = params["w_out"].shape[2]
    scale = 1.0 / math.sqrt(float(dg))

    # host-side weight packing (one-time, tiny)
    w_qk = jnp.concatenate([params["wq"] * scale, params["wk"]], axis=1)           # [E, 2E]
    b_qk = jnp.concatenate([params["bq"] * scale, params["bk"]], axis=1)           # [1, 2E]
    w_out_full = jnp.transpose(params["w_out"], (1, 0, 2)).reshape(E, G * do_g)    # [E, G*do_g]
    b_out_full = params["b_out"].reshape(1, G * do_g)                              # [1, G*do_g]

    # host-constant 0/1 replication / selection matrices (flat pair index r = i*N + j)
    ii = np.arange(N * N) // N
    jj = np.arange(N * N) % N
    rep_i = jnp.asarray(np.eye(N, dtype=np.float32)[ii])                # [NN, N]: row r -> query i
    rep_j = jnp.asarray(np.eye(N, dtype=np.float32)[jj])                # [NN, N]: row r -> key j
    rep_i_t = jnp.asarray(np.eye(N, dtype=np.float32)[ii].T)            # [N, NN]: sum over j per i
    sel_g = jnp.asarray(np.repeat(np.eye(G, dtype=np.float32), dg, axis=0))        # [E, G]
    col_rep = jnp.asarray(np.repeat(np.eye(G, dtype=np.float32), do_g, axis=1))    # [G, G*do_g]

    args = (feats, pos_flat,
            params["w_emb"], params["b_emb"],
            params["w1"], params["b1"], params["w2"], params["b2"],
            w_qk, b_qk, w_out_full, b_out_full,
            rep_i, rep_i_t, rep_j, sel_g, col_rep)

    vmem = pl.BlockSpec(memory_space=pltpu.MemorySpace.VMEM)
    return pl.pallas_call(
        _fused_kernel,
        out_shape=jax.ShapeDtypeStruct((N, G * do_g), jnp.float32),
        in_specs=[vmem] * len(args),
        out_specs=vmem,
    )(*args)


# ----------------------------------------------------------------------------
# pure-JAX reference (mirrors the PyTorch forward) for correctness checking
# ----------------------------------------------------------------------------
def reference_forward(feats, pos_flat, params, n_head):
    N = feats.shape[0]
    E = params["w_emb"].shape[1]
    G = n_head
    dg = E // G
    do_g = params["w_out"].shape[2]
    scale = 1.0 / math.sqrt(float(dg))

    soi = feats @ params["w_emb"] + params["b_emb"]
    pf1 = jnp.tanh(pos_flat @ params["w1"] + params["b1"])
    aw = (pf1 @ params["w2"] + params["b2"]).reshape(N, N, G).transpose(0, 2, 1)   # [N,G,N]

    q = soi @ params["wq"] + params["bq"]
    k = soi @ params["wk"] + params["bk"]
    qb = q.reshape(N, G, dg).transpose(1, 0, 2)
    kb = k.reshape(N, G, dg).transpose(1, 0, 2)
    aff = jnp.einsum("gnd,gmd->gnm", qb, kb) * scale
    aff = aff.transpose(1, 0, 2)                      # [N, G, N]
    weighted = aw * aff                               # fST0
    p = jax.nn.softmax(weighted, axis=2)
    pv = p.reshape(N * G, N) @ soi                    # [N*G, E]
    out_t = pv.reshape(N, G, E)
    out = jnp.einsum("nge,gej->ngj", out_t, params["w_out"]) + params["b_out"][None]
    return out.reshape(N, G * do_g)


# ----------------------------------------------------------------------------
if __name__ == "__main__":
    # small configuration implied by the module:
    #   opt.event_context_type = 'ER1' -> TSRM_input_dim = video_dim
    #   opt.d_feats = d_pos_vec = roi_emb_dim = 32, opt.n_head = 4, opt.d_o = 32
    N = 8            # num_rois
    video_dim = 16   # TSRM input dim
    d_feats = 32
    n_head = 4
    d_o = 32
    do_g = d_o // n_head

    key = jax.random.PRNGKey(0)
    keys = jax.random.split(key, 14)

    def init(k, shape, scale=0.1):
        return scale * jax.random.normal(k, shape, dtype=jnp.float32)

    params = {
        "w_emb": init(keys[0], (video_dim, d_feats)),
        "b_emb": init(keys[1], (1, d_feats)),
        "w1": init(keys[2], (d_feats, d_feats)),      # pair_pos_fc1
        "b1": init(keys[3], (1, d_feats)),
        "w2": init(keys[4], (d_feats, n_head)),       # pair_pos_fc2
        "b2": init(keys[5], (1, n_head)),
        "wq": init(keys[6], (d_feats, d_feats)),      # query_1
        "bq": init(keys[7], (1, d_feats)),
        "wk": init(keys[8], (d_feats, d_feats)),      # key_1
        "bk": init(keys[9], (1, d_feats)),
        "w_out": init(keys[10], (n_head, d_feats, do_g)),  # grouped 1x1 conv
        "b_out": init(keys[11], (n_head, do_g)),
    }

    feats = init(keys[12], (N, video_dim), scale=1.0)
    soi_select_list = [[float(i), float(i + 2 + (i % 3))] for i in range(N)]

    pos_matrix = extract_position_matrix(np.array(soi_select_list, dtype=np.float32), N)
    pos_feats = extract_position_embedding(pos_matrix, d_feats)          # [N, N, d_feats]
    pos_flat = jnp.asarray(pos_feats.reshape(N * N, d_feats), dtype=jnp.float32)

    out = ma_attention8_forward(feats, pos_flat, params, n_head)
    out = jax.block_until_ready(out)

    ref = reference_forward(feats, pos_flat, params, n_head)
    np.testing.assert_allclose(np.asarray(out), np.asarray(ref), rtol=1e-4, atol=1e-4)
    assert out.shape == (N, d_o)

    print("KERNEL_OK")
</pallas_src>

<mosaic_0001>
module attributes {stable_mosaic.version = 11 : i64} {
  func.func @_fused_kernel(%arg0: memref<8x16xf32, #tpu.memory_space<vmem>>, %arg1: memref<64x32xf32, #tpu.memory_space<vmem>>, %arg2: memref<16x32xf32, #tpu.memory_space<vmem>>, %arg3: memref<1x32xf32, #tpu.memory_space<vmem>>, %arg4: memref<32x32xf32, #tpu.memory_space<vmem>>, %arg5: memref<1x32xf32, #tpu.memory_space<vmem>>, %arg6: memref<32x4xf32, #tpu.memory_space<vmem>>, %arg7: memref<1x4xf32, #tpu.memory_space<vmem>>, %arg8: memref<32x64xf32, #tpu.memory_space<vmem>>, %arg9: memref<1x64xf32, #tpu.memory_space<vmem>>, %arg10: memref<32x32xf32, #tpu.memory_space<vmem>>, %arg11: memref<1x32xf32, #tpu.memory_space<vmem>>, %arg12: memref<64x8xf32, #tpu.memory_space<vmem>>, %arg13: memref<8x64xf32, #tpu.memory_space<vmem>>, %arg14: memref<64x8xf32, #tpu.memory_space<vmem>>, %arg15: memref<32x4xf32, #tpu.memory_space<vmem>>, %arg16: memref<4x32xf32, #tpu.memory_space<vmem>>, %arg17: memref<8x32xf32, #tpu.memory_space<vmem>>) attributes {dimension_semantics = [], scalar_prefetch = 0 : i64, scratch_operands = 0 : i64, tpu.core_type = #tpu.core_type<tc>} {
    %c0 = arith.constant 0 : index
    %c0_0 = arith.constant 0 : index
    %0 = vector.load %arg0[%c0, %c0_0] : memref<8x16xf32, #tpu.memory_space<vmem>>, vector<8x16xf32>
    %c0_1 = arith.constant 0 : index
    %c0_2 = arith.constant 0 : index
    %1 = vector.load %arg2[%c0_1, %c0_2] : memref<16x32xf32, #tpu.memory_space<vmem>>, vector<16x32xf32>
    %cst = arith.constant dense<0.000000e+00> : vector<8x32xf32>
    %2 = tpu.matmul %0, %1, %cst {dimension_numbers = #tpu.dot_dimension_numbers<[1], [0], [0], [1], [0, 0, 1, 1], [], []>} : vector<8x16xf32>, vector<16x32xf32>, vector<8x32xf32> -> vector<8x32xf32>
    %c0_3 = arith.constant 0 : index
    %c0_4 = arith.constant 0 : index
    %3 = vector.load %arg3[%c0_3, %c0_4] : memref<1x32xf32, #tpu.memory_space<vmem>>, vector<1x32xf32>
    %4 = vector.broadcast %3 : vector<1x32xf32> to vector<8x32xf32>
    %5 = arith.addf %2, %4 : vector<8x32xf32>
    %c0_5 = arith.constant 0 : index
    %c0_6 = arith.constant 0 : index
    %6 = vector.load %arg8[%c0_5, %c0_6] : memref<32x64xf32, #tpu.memory_space<vmem>>, vector<32x64xf32>
    %cst_7 = arith.constant dense<0.000000e+00> : vector<8x64xf32>
    %7 = tpu.matmul %5, %6, %cst_7 {dimension_numbers = #tpu.dot_dimension_numbers<[1], [0], [0], [1], [0, 0, 1, 1], [], []>} : vector<8x32xf32>, vector<32x64xf32>, vector<8x64xf32> -> vector<8x64xf32>
    %c0_8 = arith.constant 0 : index
    %c0_9 = arith.constant 0 : index
    %8 = vector.load %arg9[%c0_8, %c0_9] : memref<1x64xf32, #tpu.memory_space<vmem>>, vector<1x64xf32>
    %9 = vector.broadcast %8 : vector<1x64xf32> to vector<8x64xf32>
    %10 = arith.addf %7, %9 : vector<8x64xf32>
    %11 = vector.extract_strided_slice %10 {offsets = [0, 0], sizes = [8, 32], strides = [1, 1]} : vector<8x64xf32> to vector<8x32xf32>
    %12 = vector.extract_strided_slice %10 {offsets = [0, 32], sizes = [8, 32], strides = [1, 1]} : vector<8x64xf32> to vector<8x32xf32>
    %c0_10 = arith.constant 0 : index
    %c0_11 = arith.constant 0 : index
    %13 = vector.load %arg1[%c0_10, %c0_11] : memref<64x32xf32, #tpu.memory_space<vmem>>, vector<64x32xf32>
    %c0_12 = arith.constant 0 : index
    %c0_13 = arith.constant 0 : index
    %14 = vector.load %arg4[%c0_12, %c0_13] : memref<32x32xf32, #tpu.memory_space<vmem>>, vector<32x32xf32>
    %cst_14 = arith.constant dense<0.000000e+00> : vector<64x32xf32>
    %15 = tpu.matmul %13, %14, %cst_14 {dimension_numbers = #tpu.dot_dimension_numbers<[1], [0], [0], [1], [0, 0, 1, 1], [], []>} : vector<64x32xf32>, vector<32x32xf32>, vector<64x32xf32> -> vector<64x32xf32>
    %c0_15 = arith.constant 0 : index
    %c0_16 = arith.constant 0 : index
    %16 = vector.load %arg5[%c0_15, %c0_16] : memref<1x32xf32, #tpu.memory_space<vmem>>, vector<1x32xf32>
    %17 = vector.broadcast %16 : vector<1x32xf32> to vector<64x32xf32>
    %18 = arith.addf %15, %17 : vector<64x32xf32>
    %19 = math.tanh %18 : vector<64x32xf32>
    %c0_17 = arith.constant 0 : index
    %c0_18 = arith.constant 0 : index
    %20 = vector.load %arg6[%c0_17, %c0_18] : memref<32x4xf32, #tpu.memory_space<vmem>>, vector<32x4xf32>
    %cst_19 = arith.constant dense<0.000000e+00> : vector<64x4xf32>
    %21 = tpu.matmul %19, %20, %cst_19 {dimension_numbers = #tpu.dot_dimension_numbers<[1], [0], [0], [1], [0, 0, 1, 1], [], []>} : vector<64x32xf32>, vector<32x4xf32>, vector<64x4xf32> -> vector<64x4xf32>
    %c0_20 = arith.constant 0 : index
    %c0_21 = arith.constant 0 : index
    %22 = vector.load %arg7[%c0_20, %c0_21] : memref<1x4xf32, #tpu.memory_space<vmem>>, vector<1x4xf32>
    %23 = vector.broadcast %22 : vector<1x4xf32> to vector<64x4xf32>
    %24 = arith.addf %21, %23 : vector<64x4xf32>
    %c0_22 = arith.constant 0 : index
    %c0_23 = arith.constant 0 : index
    %25 = vector.load %arg12[%c0_22, %c0_23] : memref<64x8xf32, #tpu.memory_space<vmem>>, vector<64x8xf32>
    %cst_24 = arith.constant dense<0.000000e+00> : vector<64x32xf32>
    %26 = tpu.matmul %25, %11, %cst_24 {dimension_numbers = #tpu.dot_dimension_numbers<[1], [0], [0], [1], [0, 0, 1, 1], [], []>} : vector<64x8xf32>, vector<8x32xf32>, vector<64x32xf32> -> vector<64x32xf32>
    %c0_25 = arith.constant 0 : index
    %c0_26 = arith.constant 0 : index
    %27 = vector.load %arg14[%c0_25, %c0_26] : memref<64x8xf32, #tpu.memory_space<vmem>>, vector<64x8xf32>
    %cst_27 = arith.constant dense<0.000000e+00> : vector<64x32xf32>
    %28 = tpu.matmul %27, %12, %cst_27 {dimension_numbers = #tpu.dot_dimension_numbers<[1], [0], [0], [1], [0, 0, 1, 1], [], []>} : vector<64x8xf32>, vector<8x32xf32>, vector<64x32xf32> -> vector<64x32xf32>
    %29 = arith.mulf %26, %28 : vector<64x32xf32>
    %c0_28 = arith.constant 0 : index
    %c0_29 = arith.constant 0 : index
    %30 = vector.load %arg15[%c0_28, %c0_29] : memref<32x4xf32, #tpu.memory_space<vmem>>, vector<32x4xf32>
    %cst_30 = arith.constant dense<0.000000e+00> : vector<64x4xf32>
    %31 = tpu.matmul %29, %30, %cst_30 {dimension_numbers = #tpu.dot_dimension_numbers<[1], [0], [0], [1], [0, 0, 1, 1], [], []>} : vector<64x32xf32>, vector<32x4xf32>, vector<64x4xf32> -> vector<64x4xf32>
    %32 = arith.mulf %24, %31 : vector<64x4xf32>
    %cst_31 = arith.constant dense<0xFF800000> : vector<4xf32>
    %33 = vector.multi_reduction <maximumf>, %32, %cst_31 [0] : vector<64x4xf32> to vector<4xf32>
    %34 = vector.shape_cast %33 : vector<4xf32> to vector<1x4xf32>
    %35 = vector.broadcast %34 : vector<1x4xf32> to vector<64x4xf32>
    %36 = arith.subf %32, %35 : vector<64x4xf32>
    %37 = math.exp %36 : vector<64x4xf32>
    %c0_32 = arith.constant 0 : index
    %c0_33 = arith.constant 0 : index
    %38 = vector.load %arg13[%c0_32, %c0_33] : memref<8x64xf32, #tpu.memory_space<vmem>>, vector<8x64xf32>
    %cst_34 = arith.constant dense<0.000000e+00> : vector<8x4xf32>
    %39 = tpu.matmul %38, %37, %cst_34 {dimension_numbers = #tpu.dot_dimension_numbers<[1], [0], [0], [1], [0, 0, 1, 1], [], []>} : vector<8x64xf32>, vector<64x4xf32>, vector<8x4xf32> -> vector<8x4xf32>
    %c0_35 = arith.constant 0 : index
    %c0_36 = arith.constant 0 : index
    %40 = vector.load %arg12[%c0_35, %c0_36] : memref<64x8xf32, #tpu.memory_space<vmem>>, vector<64x8xf32>
    %cst_37 = arith.constant dense<0.000000e+00> : vector<64x4xf32>
    %41 = tpu.matmul %40, %39, %cst_37 {dimension_numbers = #tpu.dot_dimension_numbers<[1], [0], [0], [1], [0, 0, 1, 1], [], []>} : vector<64x8xf32>, vector<8x4xf32>, vector<64x4xf32> -> vector<64x4xf32>
    %42 = tpu.reciprocal %41 : vector<64x4xf32> -> vector<64x4xf32>
    %43 = arith.mulf %37, %42 : vector<64x4xf32>
    %c0_38 = arith.constant 0 : index
    %c0_39 = arith.constant 0 : index
    %44 = vector.load %arg16[%c0_38, %c0_39] : memref<4x32xf32, #tpu.memory_space<vmem>>, vector<4x32xf32>
    %cst_40 = arith.constant dense<0.000000e+00> : vector<64x32xf32>
    %45 = tpu.matmul %43, %44, %cst_40 {dimension_numbers = #tpu.dot_dimension_numbers<[1], [0], [0], [1], [0, 0, 1, 1], [], []>} : vector<64x4xf32>, vector<4x32xf32>, vector<64x32xf32> -> vector<64x32xf32>
    %c0_41 = arith.constant 0 : index
    %c0_42 = arith.constant 0 : index
    %46 = vector.load %arg10[%c0_41, %c0_42] : memref<32x32xf32, #tpu.memory_space<vmem>>, vector<32x32xf32>
    %cst_43 = arith.constant dense<0.000000e+00> : vector<8x32xf32>
    %47 = tpu.matmul %5, %46, %cst_43 {dimension_numbers = #tpu.dot_dimension_numbers<[1], [0], [0], [1], [0, 0, 1, 1], [], []>} : vector<8x32xf32>, vector<32x32xf32>, vector<8x32xf32> -> vector<8x32xf32>
    %c0_44 = arith.constant 0 : index
    %c0_45 = arith.constant 0 : index
    %48 = vector.load %arg14[%c0_44, %c0_45] : memref<64x8xf32, #tpu.memory_space<vmem>>, vector<64x8xf32>
    %cst_46 = arith.constant dense<0.000000e+00> : vector<64x32xf32>
    %49 = tpu.matmul %48, %47, %cst_46 {dimension_numbers = #tpu.dot_dimension_numbers<[1], [0], [0], [1], [0, 0, 1, 1], [], []>} : vector<64x8xf32>, vector<8x32xf32>, vector<64x32xf32> -> vector<64x32xf32>
    %c0_47 = arith.constant 0 : index
    %c0_48 = arith.constant 0 : index
    %50 = vector.load %arg13[%c0_47, %c0_48] : memref<8x64xf32, #tpu.memory_space<vmem>>, vector<8x64xf32>
    %51 = arith.mulf %45, %49 : vector<64x32xf32>
    %cst_49 = arith.constant dense<0.000000e+00> : vector<8x32xf32>
    %52 = tpu.matmul %50, %51, %cst_49 {dimension_numbers = #tpu.dot_dimension_numbers<[1], [0], [0], [1], [0, 0, 1, 1], [], []>} : vector<8x64xf32>, vector<64x32xf32>, vector<8x32xf32> -> vector<8x32xf32>
    %c0_50 = arith.constant 0 : index
    %c0_51 = arith.constant 0 : index
    %53 = vector.load %arg11[%c0_50, %c0_51] : memref<1x32xf32, #tpu.memory_space<vmem>>, vector<1x32xf32>
    %54 = vector.broadcast %53 : vector<1x32xf32> to vector<8x32xf32>
    %55 = arith.addf %52, %54 : vector<8x32xf32>
    %c0_52 = arith.constant 0 : index
    %c0_53 = arith.constant 0 : index
    %56 = vector.load %arg17[%c0_52, %c0_53] : memref<8x32xf32, #tpu.memory_space<vmem>>, vector<8x32xf32>
    tpu.vector_store %arg17[%c0_52, %c0_53], %55 {strides = array<i32>} : memref<8x32xf32, #tpu.memory_space<vmem>>, vector<8x32xf32>,
    return
  }
}

</mosaic_0001>

<llo_original>
// kernel: tpu_custom_call.1
$region0: #{tpu_custom_call.1}
  #allocation0 [shape = 'u32[]', space=smem, size = 0x4, offset = 0x4, fixed_abs, tag = 'smem constant byte address 0x4 - core index']
  #allocation1 [shape = 'u32[144,128]{1,0:T(1,128)}', space=vmem, size = 0x12000, scoped, tag = 'internal scratch']
  %s0 = inlined_call_operand.vmem [shape: f32[8,16], index: 0, kind: input, shape index: {}]
  %s1 = inlined_call_operand.vmem [shape: f32[64,32], index: 1, kind: input, shape index: {}]
  %s2 = inlined_call_operand.vmem [shape: f32[16,32], index: 2, kind: input, shape index: {}]
  %s3 = inlined_call_operand.vmem [shape: f32[1,32], index: 3, kind: input, shape index: {}]
  %s4 = inlined_call_operand.vmem [shape: f32[32,32], index: 4, kind: input, shape index: {}]
  %s5 = inlined_call_operand.vmem [shape: f32[1,32], index: 5, kind: input, shape index: {}]
  %s6 = inlined_call_operand.vmem [shape: f32[32,4], index: 6, kind: input, shape index: {}]
  %s7 = inlined_call_operand.vmem [shape: f32[1,4], index: 7, kind: input, shape index: {}]
  %s8 = inlined_call_operand.vmem [shape: f32[32,64], index: 8, kind: input, shape index: {}]
  %s9 = inlined_call_operand.vmem [shape: f32[1,64], index: 9, kind: input, shape index: {}]
  %s10 = inlined_call_operand.vmem [shape: f32[32,32], index: 10, kind: input, shape index: {}]
  %s11 = inlined_call_operand.vmem [shape: f32[1,32], index: 11, kind: input, shape index: {}]
  %s12 = inlined_call_operand.vmem [shape: f32[64,8], index: 12, kind: input, shape index: {}]
  %s13 = inlined_call_operand.vmem [shape: f32[8,64], index: 13, kind: input, shape index: {}]
  %s14 = inlined_call_operand.vmem [shape: f32[64,8], index: 14, kind: input, shape index: {}]
  %s15 = inlined_call_operand.vmem [shape: f32[32,4], index: 15, kind: input, shape index: {}]
  %s16 = inlined_call_operand.vmem [shape: f32[4,32], index: 16, kind: input, shape index: {}]
  %s17 = inlined_call_operand.hbm [shape: f32[8,32], index: 17, kind: output, shape index: {}]
  %s18 = sld [smem:[#allocation0]]
  $region78: #{tpu_custom_call.1} parent=0
    _
  %s20 = ssub.s32 1, %s18
  %s21 = scalar_select 0, %s20, %s18
  $region1: #{tpu_custom_call.1} parent=0
    #allocation2 [shape = 'u8[4096]{0}', space=vmem, size = 0x1000, scoped, tag = 'output window, operand 0, single buffered']
    #allocation3 [shape = 's32[1]{0}', space=sflag, size = 0x4, scoped, tag = 'scoped memory for tpu_custom_call.1']
    %22 = vsyncpa [#allocation3], 0
    // Predicated region
    $region2: #{tpu_custom_call.1} parent=1 // pred_check
      _
    $region3: #{tpu_custom_call.1} parent=1 // pred_check_branch
      %24 = sbr.rel (0) target = $region5
    $region4: #{tpu_custom_call.1} parent=1 // pred_region
      _
    $region5: #{tpu_custom_call.1} parent=1 // pred_fallthru
      _
    // Predicated region
    $region6: #{tpu_custom_call.1} parent=1 // pred_check
      _
    $region7: #{tpu_custom_call.1} parent=1 // pred_check_branch
      %26 = sbr.rel (0) target = $region9
    $region8: #{tpu_custom_call.1} parent=1 // pred_region
      _
    $region9: #{tpu_custom_call.1} parent=1 // pred_fallthru
      _
    // Predicated region
    $region10: #{tpu_custom_call.1} parent=1 // pred_check
      _
    $region11: #{tpu_custom_call.1} parent=1 // pred_check_branch
      %28 = sbr.rel (0) target = $region13
    $region12: #{tpu_custom_call.1} parent=1 // pred_region
      _
    $region13: #{tpu_custom_call.1} parent=1 // pred_fallthru
      _
    // Predicated region
    $region14: #{tpu_custom_call.1} parent=1 // pred_check
      _
    $region15: #{tpu_custom_call.1} parent=1 // pred_check_branch
      %30 = sbr.rel (0) target = $region17
    $region16: #{tpu_custom_call.1} parent=1 // pred_region
      _
    $region17: #{tpu_custom_call.1} parent=1 // pred_fallthru
      _
    // Predicated region
    $region18: #{tpu_custom_call.1} parent=1 // pred_check
      _
    $region19: #{tpu_custom_call.1} parent=1 // pred_check_branch
      %32 = sbr.rel (0) target = $region21
    $region20: #{tpu_custom_call.1} parent=1 // pred_region
      _
    $region21: #{tpu_custom_call.1} parent=1 // pred_fallthru
      _
    // Predicated region
    $region22: #{tpu_custom_call.1} parent=1 // pred_check
      _
    $region23: #{tpu_custom_call.1} parent=1 // pred_check_branch
      %34 = sbr.rel (0) target = $region25
    $region24: #{tpu_custom_call.1} parent=1 // pred_region
      _
    $region25: #{tpu_custom_call.1} parent=1 // pred_fallthru
      _
    // Predicated region
    $region26: #{tpu_custom_call.1} parent=1 // pred_check
      _
    $region27: #{tpu_custom_call.1} parent=1 // pred_check_branch
      %36 = sbr.rel (0) target = $region29
    $region28: #{tpu_custom_call.1} parent=1 // pred_region
      _
    $region29: #{tpu_custom_call.1} parent=1 // pred_fallthru
      _
    // Predicated region
    $region30: #{tpu_custom_call.1} parent=1 // pred_check
      _
    $region31: #{tpu_custom_call.1} parent=1 // pred_check_branch
      %38 = sbr.rel (0) target = $region33
    $region32: #{tpu_custom_call.1} parent=1 // pred_region
      _
    $region33: #{tpu_custom_call.1} parent=1 // pred_fallthru
      _
    // Predicated region
    $region34: #{tpu_custom_call.1} parent=1 // pred_check
      _
    $region35: #{tpu_custom_call.1} parent=1 // pred_check_branch
      %40 = sbr.rel (0) target = $region37
    $region36: #{tpu_custom_call.1} parent=1 // pred_region
      _
    $region37: #{tpu_custom_call.1} parent=1 // pred_fallthru
      _
    // Predicated region
    $region38: #{tpu_custom_call.1} parent=1 // pred_check
      _
    $region39: #{tpu_custom_call.1} parent=1 // pred_check_branch
      %42 = sbr.rel (0) target = $region41
    $region40: #{tpu_custom_call.1} parent=1 // pred_region
      _
    $region41: #{tpu_custom_call.1} parent=1 // pred_fallthru
      _
    // Predicated region
    $region42: #{tpu_custom_call.1} parent=1 // pred_check
      _
    $region43: #{tpu_custom_call.1} parent=1 // pred_check_branch
      %44 = sbr.rel (0) target = $region45
    $region44: #{tpu_custom_call.1} parent=1 // pred_region
      _
    $region45: #{tpu_custom_call.1} parent=1 // pred_fallthru
      _
    // Predicated region
    $region46: #{tpu_custom_call.1} parent=1 // pred_check
      _
    $region47: #{tpu_custom_call.1} parent=1 // pred_check_branch
      %46 = sbr.rel (0) target = $region49
    $region48: #{tpu_custom_call.1} parent=1 // pred_region
      _
    $region49: #{tpu_custom_call.1} parent=1 // pred_fallthru
      _
    // Predicated region
    $region50: #{tpu_custom_call.1} parent=1 // pred_check
      _
    $region51: #{tpu_custom_call.1} parent=1 // pred_check_branch
      %48 = sbr.rel (0) target = $region53
    $region52: #{tpu_custom_call.1} parent=1 // pred_region
      _
    $region53: #{tpu_custom_call.1} parent=1 // pred_fallthru
      _
    // Predicated region
    $region54: #{tpu_custom_call.1} parent=1 // pred_check
      _
    $region55: #{tpu_custom_call.1} parent=1 // pred_check_branch
      %50 = sbr.rel (0) target = $region57
    $region56: #{tpu_custom_call.1} parent=1 // pred_region
      _
    $region57: #{tpu_custom_call.1} parent=1 // pred_fallthru
      _
    // Predicated region
    $region58: #{tpu_custom_call.1} parent=1 // pred_check
      _
    $region59: #{tpu_custom_call.1} parent=1 // pred_check_branch
      %52 = sbr.rel (0) target = $region61
    $region60: #{tpu_custom_call.1} parent=1 // pred_region
      _
    $region61: #{tpu_custom_call.1} parent=1 // pred_fallthru
      _
    // Predicated region
    $region62: #{tpu_custom_call.1} parent=1 // pred_check
      _
    $region63: #{tpu_custom_call.1} parent=1 // pred_check_branch
      %54 = sbr.rel (0) target = $region65
    $region64: #{tpu_custom_call.1} parent=1 // pred_region
      _
    $region65: #{tpu_custom_call.1} parent=1 // pred_fallthru
      _
    // Predicated region
    $region66: #{tpu_custom_call.1} parent=1 // pred_check
      _
    $region67: #{tpu_custom_call.1} parent=1 // pred_check_branch
      %56 = sbr.rel (0) target = $region69
    $region68: #{tpu_custom_call.1} parent=1 // pred_region
      _
    $region69: #{tpu_custom_call.1} parent=1 // pred_fallthru
      _
    %v57 = vld [vmem:[%s0] sm:$0xff]
    %v58 = vld [vmem:[%s2] sm:$0xff]
    %v59 = vld [vmem:[%s2 + $0x8] sm:$0xff]
    %v60 = vld [vmem:[%s3] sm:$0x1]
    %v62 = vlaneseq
    %v63 = vshrl.u32 %v62, 7
    %v64 = vsub.s32 0, %v63
    %v65 = vrot.slane %v60, %v64
    %vm67 = vcmask 130048
    %v69 = vsel %vm67, %v57, 0
    %71 = vmatprep.subr.mxu0 0.0
    %72 = vmatpush1.msra.mxu0 0.0
    %73 = vmatprep.subr.mxu0 0.0
    %74 = vmatpush1.msra.mxu0 0.0
    %75 = vmatprep.subr.mxu0 0.0
    %76 = vmatpush1.msra.mxu0 0.0
    %77 = vmatprep.subr.mxu0 0.0
    %78 = vmatpush1.msra.mxu0 0.0
    %79 = vmatprep.subr.mxu0 0.0
    %80 = vmatpush1.msra.mxu0 0.0
    %81 = vmatprep.subr.mxu0 0.0
    %82 = vmatpush1.msra.mxu0 0.0
    %83 = vmatprep.subr.mxu0 0.0
    %84 = vmatpush1.msra.mxu0 0.0
    %85 = vmatprep.subr.mxu0 0.0
    %86 = vmatpush1.msra.mxu0 0.0
    %87 = vmatprep.subr.mxu0 0.0
    %88 = vmatpush1.msra.mxu0 0.0
    %89 = vmatprep.subr.mxu0 0.0
    %90 = vmatpush1.msra.mxu0 0.0
    %91 = vmatprep.subr.mxu0 0.0
    %92 = vmatpush1.msra.mxu0 0.0
    %93 = vmatprep.subr.mxu0 0.0
    %94 = vmatpush1.msra.mxu0 0.0
    %95 = vmatprep.subr.mxu0 0.0
    %96 = vmatpush1.msra.mxu0 0.0
    %97 = vmatprep.subr.mxu0 0.0
    %98 = vmatpush1.msra.mxu0 0.0
    %99 = vmatprep.subr.mxu0 0.0
    %100 = vmatpush1.msra.mxu0 %v59
    %101 = vmatprep.subr.mxu0 0.0
    %102 = vmatpush1.msra.mxu0 %v58
    %103 = vmatprep.subr.mxu0 0.0
    %104 = vmatpush2.msra.mxu0 0.0
    %105 = vmatprep.subr.mxu0 0.0
    %106 = vmatpush2.msra.mxu0 0.0
    %107 = vmatprep.subr.mxu0 0.0
    %108 = vmatpush2.msra.mxu0 0.0
    %109 = vmatprep.subr.mxu0 0.0
    %110 = vmatpush2.msra.mxu0 0.0
    %111 = vmatprep.subr.mxu0 0.0
    %112 = vmatpush2.msra.mxu0 0.0
    %113 = vmatprep.subr.mxu0 0.0
    %114 = vmatpush2.msra.mxu0 0.0
    %115 = vmatprep.subr.mxu0 0.0
    %116 = vmatpush2.msra.mxu0 0.0
    %117 = vmatprep.subr.mxu0 0.0
    %118 = vmatpush2.msra.mxu0 0.0
    %119 = vmatprep.subr.mxu0 0.0
    %120 = vmatpush2.msra.mxu0 0.0
    %121 = vmatprep.subr.mxu0 0.0
    %122 = vmatpush2.msra.mxu0 0.0
    %123 = vmatprep.subr.mxu0 0.0
    %124 = vmatpush2.msra.mxu0 0.0
    %125 = vmatprep.subr.mxu0 0.0
    %126 = vmatpush2.msra.mxu0 0.0
    %127 = vmatprep.subr.mxu0 0.0
    %128 = vmatpush2.msra.mxu0 0.0
    %129 = vmatprep.subr.mxu0 0.0
    %130 = vmatpush2.msra.mxu0 0.0
    %131 = vmatprep.subr.mxu0 0.0
    %132 = vmatpush2.msra.mxu0 0.0
    %133 = vmatprep.subr.mxu0 0.0
    %134 = vmatpush2.msra.mxu0 0.0
    %135 = vmatprep.mubr.f32.mxu0 0.0
    %136 = vmatmul.mubr.f32.gmra.mxu0 %v69
    %v137 = vpop.f32.mrf.mxu0
    %v138 = vadd.f32 %v65, %v137
    %v139 = vpop.f32.mrf.mxu0
    %140 = vdwg.mxu0
    %v141 = vld [vmem:[%s8] sm:$0xff]
    %v142 = vld [vmem:[%s8 + $0x8] sm:$0xff]
    %v143 = vld [vmem:[%s8 + $0x10] sm:$0xff]
    %v144 = vld [vmem:[%s8 + $0x18] sm:$0xff]
    %v145 = vld [vmem:[%s9] sm:$0x1]
    %v147 = vlaneseq
    %v148 = vshrl.u32 %v147, 7
    %v149 = vsub.s32 0, %v148
    %v150 = vrot.slane %v145, %v149
    %vm152 = vcmask 261120
    %v154 = vsel %vm152, %v138, 0
    %156 = vmatprep.subr.mxu0 0.0
    %157 = vmatpush1.msra.mxu0 0.0
    %158 = vmatprep.subr.mxu0 0.0
    %159 = vmatpush1.msra.mxu0 0.0
    %160 = vmatprep.subr.mxu0 0.0
    %161 = vmatpush1.msra.mxu0 0.0
    %162 = vmatprep.subr.mxu0 0.0
    %163 = vmatpush1.msra.mxu0 0.0
    %164 = vmatprep.subr.mxu0 0.0
    %165 = vmatpush1.msra.mxu0 0.0
    %166 = vmatprep.subr.mxu0 0.0
    %167 = vmatpush1.msra.mxu0 0.0
    %168 = vmatprep.subr.mxu0 0.0
    %169 = vmatpush1.msra.mxu0 0.0
    %170 = vmatprep.subr.mxu0 0.0
    %171 = vmatpush1.msra.mxu0 0.0
    %172 = vmatprep.subr.mxu0 0.0
    %173 = vmatpush1.msra.mxu0 0.0
    %174 = vmatprep.subr.mxu0 0.0
    %175 = vmatpush1.msra.mxu0 0.0
    %176 = vmatprep.subr.mxu0 0.0
    %177 = vmatpush1.msra.mxu0 0.0
    %178 = vmatprep.subr.mxu0 0.0
    %179 = vmatpush1.msra.mxu0 0.0
    %180 = vmatprep.subr.mxu0 0.0
    %181 = vmatpush1.msra.mxu0 %v144
    %182 = vmatprep.subr.mxu0 0.0
    %183 = vmatpush1.msra.mxu0 %v143
    %184 = vmatprep.subr.mxu0 0.0
    %185 = vmatpush1.msra.mxu0 %v142
    %186 = vmatprep.subr.mxu0 0.0
    %187 = vmatpush1.msra.mxu0 %v141
    %188 = vmatprep.subr.mxu0 0.0
    %189 = vmatpush2.msra.mxu0 0.0
    %190 = vmatprep.subr.mxu0 0.0
    %191 = vmatpush2.msra.mxu0 0.0
    %192 = vmatprep.subr.mxu0 0.0
    %193 = vmatpush2.msra.mxu0 0.0
    %194 = vmatprep.subr.mxu0 0.0
    %195 = vmatpush2.msra.mxu0 0.0
    %196 = vmatprep.subr.mxu0 0.0
    %197 = vmatpush2.msra.mxu0 0.0
    %198 = vmatprep.subr.mxu0 0.0
    %199 = vmatpush2.msra.mxu0 0.0
    %200 = vmatprep.subr.mxu0 0.0
    %201 = vmatpush2.msra.mxu0 0.0
    %202 = vmatprep.subr.mxu0 0.0
    %203 = vmatpush2.msra.mxu0 0.0
    %204 = vmatprep.subr.mxu0 0.0
    %205 = vmatpush2.msra.mxu0 0.0
    %206 = vmatprep.subr.mxu0 0.0
    %207 = vmatpush2.msra.mxu0 0.0
    %208 = vmatprep.subr.mxu0 0.0
    %209 = vmatpush2.msra.mxu0 0.0
    %210 = vmatprep.subr.mxu0 0.0
    %211 = vmatpush2.msra.mxu0 0.0
    %212 = vmatprep.subr.mxu0 0.0
    %213 = vmatpush2.msra.mxu0 0.0
    %214 = vmatprep.subr.mxu0 0.0
    %215 = vmatpush2.msra.mxu0 0.0
    %216 = vmatprep.subr.mxu0 0.0
    %217 = vmatpush2.msra.mxu0 0.0
    %218 = vmatprep.subr.mxu0 0.0
    %219 = vmatpush2.msra.mxu0 0.0
    %220 = vmatprep.mubr.f32.mxu0 0.0
    %221 = vmatmul.mubr.f32.gmra.mxu0 %v154
    %v222 = vpop.f32.mrf.mxu0
    %v223 = vadd.f32 %v150, %v222
    %v224 = vpop.f32.mrf.mxu0
    %225 = vdwg.mxu0
    %v226 = vld [vmem:[%s1] sm:$0xff]
    %v227 = vld [vmem:[%s1 + $0x8] sm:$0xff]
    %v228 = vld [vmem:[%s1 + $0x10] sm:$0xff]
    %v229 = vld [vmem:[%s1 + $0x18] sm:$0xff]
    %v230 = vld [vmem:[%s1 + $0x20] sm:$0xff]
    %v231 = vld [vmem:[%s1 + $0x28] sm:$0xff]
    %v232 = vld [vmem:[%s1 + $0x30] sm:$0xff]
    %v233 = vld [vmem:[%s1 + $0x38] sm:$0xff]
    %v234 = vld [vmem:[%s4] sm:$0xff]
    %v235 = vld [vmem:[%s4 + $0x8] sm:$0xff]
    %v236 = vld [vmem:[%s4 + $0x10] sm:$0xff]
    %v237 = vld [vmem:[%s4 + $0x18] sm:$0xff]
    %v238 = vld [vmem:[%s5] sm:$0x1]
    %v240 = vlaneseq
    %v241 = vshrl.u32 %v240, 7
    %v242 = vsub.s32 0, %v241
    %v243 = vrot.slane %v238, %v242
    %v246 = vsel %vm152, %v226, 0
    %v249 = vsel %vm152, %v227, 0
    %v252 = vsel %vm152, %v228, 0
    %v255 = vsel %vm152, %v229, 0
    %v258 = vsel %vm152, %v230, 0
    %v261 = vsel %vm152, %v231, 0
    %v264 = vsel %vm152, %v232, 0
    %v267 = vsel %vm152, %v233, 0
    %269 = vmatprep.subr.mxu0 0.0
    %270 = vmatpush1.msra.mxu0 0.0
    %271 = vmatprep.subr.mxu0 0.0
    %272 = vmatpush1.msra.mxu0 0.0
    %273 = vmatprep.subr.mxu0 0.0
    %274 = vmatpush1.msra.mxu0 0.0
    %275 = vmatprep.subr.mxu0 0.0
    %276 = vmatpush1.msra.mxu0 0.0
    %277 = vmatprep.subr.mxu0 0.0
    %278 = vmatpush1.msra.mxu0 0.0
    %279 = vmatprep.subr.mxu0 0.0
    %280 = vmatpush1.msra.mxu0 0.0
    %281 = vmatprep.subr.mxu0 0.0
    %282 = vmatpush1.msra.mxu0 0.0
    %283 = vmatprep.subr.mxu0 0.0
    %284 = vmatpush1.msra.mxu0 0.0
    %285 = vmatprep.subr.mxu0 0.0
    %286 = vmatpush1.msra.mxu0 0.0
    %287 = vmatprep.subr.mxu0 0.0
    %288 = vmatpush1.msra.mxu0 0.0
    %289 = vmatprep.subr.mxu0 0.0
    %290 = vmatpush1.msra.mxu0 0.0
    %291 = vmatprep.subr.mxu0 0.0
    %292 = vmatpush1.msra.mxu0 0.0
    %293 = vmatprep.subr.mxu0 0.0
    %294 = vmatpush1.msra.mxu0 %v237
    %295 = vmatprep.subr.mxu0 0.0
    %296 = vmatpush1.msra.mxu0 %v236
    %297 = vmatprep.subr.mxu0 0.0
    %298 = vmatpush1.msra.mxu0 %v235
    %299 = vmatprep.subr.mxu0 0.0
    %300 = vmatpush1.msra.mxu0 %v234
    %301 = vmatprep.subr.mxu0 0.0
    %302 = vmatpush2.msra.mxu0 0.0
    %303 = vmatprep.subr.mxu0 0.0
    %304 = vmatpush2.msra.mxu0 0.0
    %305 = vmatprep.subr.mxu0 0.0
    %306 = vmatpush2.msra.mxu0 0.0
    %307 = vmatprep.subr.mxu0 0.0
    %308 = vmatpush2.msra.mxu0 0.0
    %309 = vmatprep.subr.mxu0 0.0
    %310 = vmatpush2.msra.mxu0 0.0
    %311 = vmatprep.subr.mxu0 0.0
    %312 = vmatpush2.msra.mxu0 0.0
    %313 = vmatprep.subr.mxu0 0.0
    %314 = vmatpush2.msra.mxu0 0.0
    %315 = vmatprep.subr.mxu0 0.0
    %316 = vmatpush2.msra.mxu0 0.0
    %317 = vmatprep.subr.mxu0 0.0
    %318 = vmatpush2.msra.mxu0 0.0
    %319 = vmatprep.subr.mxu0 0.0
    %320 = vmatpush2.msra.mxu0 0.0
    %321 = vmatprep.subr.mxu0 0.0
    %322 = vmatpush2.msra.mxu0 0.0
    %323 = vmatprep.subr.mxu0 0.0
    %324 = vmatpush2.msra.mxu0 0.0
    %325 = vmatprep.subr.mxu0 0.0
    %326 = vmatpush2.msra.mxu0 0.0
    %327 = vmatprep.subr.mxu0 0.0
    %328 = vmatpush2.msra.mxu0 0.0
    %329 = vmatprep.subr.mxu0 0.0
    %330 = vmatpush2.msra.mxu0 0.0
    %331 = vmatprep.subr.mxu0 0.0
    %332 = vmatpush2.msra.mxu0 0.0
    %333 = vmatprep.mubr.f32.mxu0 0.0
    %334 = vmatmul.mubr.f32.gmra.mxu0 %v246
    %v335 = vpop.f32.mrf.mxu0
    %v336 = vadd.f32 %v243, %v335
    %v337 = vpop.f32.mrf.mxu0
    %338 = vmatprep.mubr.f32.mxu0 0.0
    %339 = vmatmul.mubr.f32.gmra.mxu0 %v249
    %v340 = vpop.f32.mrf.mxu0
    %v341 = vadd.f32 %v243, %v340
    %v342 = vpop.f32.mrf.mxu0
    %343 = vmatprep.mubr.f32.mxu0 0.0
    %344 = vmatmul.mubr.f32.gmra.mxu0 %v252
    %v345 = vpop.f32.mrf.mxu0
    %v346 = vadd.f32 %v243, %v345
    %v347 = vpop.f32.mrf.mxu0
    %348 = vmatprep.mubr.f32.mxu0 0.0
    %349 = vmatmul.mubr.f32.gmra.mxu0 %v255
    %v350 = vpop.f32.mrf.mxu0
    %v351 = vadd.f32 %v243, %v350
    %v352 = vpop.f32.mrf.mxu0
    %353 = vmatprep.mubr.f32.mxu0 0.0
    %354 = vmatmul.mubr.f32.gmra.mxu0 %v258
    %v355 = vpop.f32.mrf.mxu0
    %v356 = vadd.f32 %v243, %v355
    %v357 = vpop.f32.mrf.mxu0
    %358 = vmatprep.mubr.f32.mxu0 0.0
    %359 = vmatmul.mubr.f32.gmra.mxu0 %v261
    %v360 = vpop.f32.mrf.mxu0
    %v361 = vadd.f32 %v243, %v360
    %v362 = vpop.f32.mrf.mxu0
    %363 = vmatprep.mubr.f32.mxu0 0.0
    %364 = vmatmul.mubr.f32.gmra.mxu0 %v264
    %v365 = vpop.f32.mrf.mxu0
    %v366 = vadd.f32 %v243, %v365
    %v367 = vpop.f32.mrf.mxu0
    %368 = vmatprep.mubr.f32.mxu0 0.0
    %369 = vmatmul.mubr.f32.gmra.mxu0 %v267
    %v370 = vpop.f32.mrf.mxu0
    %v371 = vadd.f32 %v243, %v370
    %v372 = vpop.f32.mrf.mxu0
    %373 = vdwg.mxu0
    %v374 = vtanh.pop %v336
    %v375 = vtanh.pop %v341
    %v376 = vtanh.pop %v346
    %v377 = vtanh.pop %v351
    %v378 = vtanh.pop %v356
    %v379 = vtanh.pop %v361
    %v380 = vtanh.pop %v366
    %v381 = vtanh.pop %v371
    %v382 = vld [vmem:[%s6] sm:$0xff]
    %v383 = vld [vmem:[%s6 + $0x8] sm:$0xff]
    %v384 = vld [vmem:[%s6 + $0x10] sm:$0xff]
    %v385 = vld [vmem:[%s6 + $0x18] sm:$0xff]
    %v386 = vld [vmem:[%s7] sm:$0x1]
    %v388 = vlaneseq
    %v389 = vshrl.u32 %v388, 7
    %v390 = vsub.s32 0, %v389
    %v391 = vrot.slane %v386, %v390
    %v394 = vsel %vm152, %v374, 0
    %v397 = vsel %vm152, %v375, 0
    %v400 = vsel %vm152, %v376, 0
    %v403 = vsel %vm152, %v377, 0
    %v406 = vsel %vm152, %v378, 0
    %v409 = vsel %vm152, %v379, 0
    %v412 = vsel %vm152, %v380, 0
    %v415 = vsel %vm152, %v381, 0
    %417 = vmatprep.subr.mxu0 0.0
    %418 = vmatpush1.msra.mxu0 0.0
    %419 = vmatprep.subr.mxu0 0.0
    %420 = vmatpush1.msra.mxu0 0.0
    %421 = vmatprep.subr.mxu0 0.0
    %422 = vmatpush1.msra.mxu0 0.0
    %423 = vmatprep.subr.mxu0 0.0
    %424 = vmatpush1.msra.mxu0 0.0
    %425 = vmatprep.subr.mxu0 0.0
    %426 = vmatpush1.msra.mxu0 0.0
    %427 = vmatprep.subr.mxu0 0.0
    %428 = vmatpush1.msra.mxu0 0.0
    %429 = vmatprep.subr.mxu0 0.0
    %430 = vmatpush1.msra.mxu0 0.0
    %431 = vmatprep.subr.mxu0 0.0
    %432 = vmatpush1.msra.mxu0 0.0
    %433 = vmatprep.subr.mxu0 0.0
    %434 = vmatpush1.msra.mxu0 0.0
    %435 = vmatprep.subr.mxu0 0.0
    %436 = vmatpush1.msra.mxu0 0.0
    %437 = vmatprep.subr.mxu0 0.0
    %438 = vmatpush1.msra.mxu0 0.0
    %439 = vmatprep.subr.mxu0 0.0
    %440 = vmatpush1.msra.mxu0 0.0
    %441 = vmatprep.subr.mxu0 0.0
    %442 = vmatpush1.msra.mxu0 %v385
    %443 = vmatprep.subr.mxu0 0.0
    %444 = vmatpush1.msra.mxu0 %v384
    %445 = vmatprep.subr.mxu0 0.0
    %446 = vmatpush1.msra.mxu0 %v383
    %447 = vmatprep.subr.mxu0 0.0
    %448 = vmatpush1.msra.mxu0 %v382
    %449 = vmatprep.subr.mxu0 0.0
    %450 = vmatpush2.msra.mxu0 0.0
    %451 = vmatprep.subr.mxu0 0.0
    %452 = vmatpush2.msra.mxu0 0.0
    %453 = vmatprep.subr.mxu0 0.0
    %454 = vmatpush2.msra.mxu0 0.0
    %455 = vmatprep.subr.mxu0 0.0
    %456 = vmatpush2.msra.mxu0 0.0
    %457 = vmatprep.subr.mxu0 0.0
    %458 = vmatpush2.msra.mxu0 0.0
    %459 = vmatprep.subr.mxu0 0.0
    %460 = vmatpush2.msra.mxu0 0.0
    %461 = vmatprep.subr.mxu0 0.0
    %462 = vmatpush2.msra.mxu0 0.0
    %463 = vmatprep.subr.mxu0 0.0
    %464 = vmatpush2.msra.mxu0 0.0
    %465 = vmatprep.subr.mxu0 0.0
    %466 = vmatpush2.msra.mxu0 0.0
    %467 = vmatprep.subr.mxu0 0.0
    %468 = vmatpush2.msra.mxu0 0.0
    %469 = vmatprep.subr.mxu0 0.0
    %470 = vmatpush2.msra.mxu0 0.0
    %471 = vmatprep.subr.mxu0 0.0
    %472 = vmatpush2.msra.mxu0 0.0
    %473 = vmatprep.subr.mxu0 0.0
    %474 = vmatpush2.msra.mxu0 0.0
    %475 = vmatprep.subr.mxu0 0.0
    %476 = vmatpush2.msra.mxu0 0.0
    %477 = vmatprep.subr.mxu0 0.0
    %478 = vmatpush2.msra.mxu0 0.0
    %479 = vmatprep.subr.mxu0 0.0
    %480 = vmatpush2.msra.mxu0 0.0
    %481 = vmatprep.mubr.f32.mxu0 0.0
    %482 = vmatmul.mubr.f32.gmra.mxu0 %v394
    %v483 = vpop.f32.mrf.mxu0
    %v484 = vadd.f32 %v391, %v483
    %v485 = vpop.f32.mrf.mxu0
    %486 = vmatprep.mubr.f32.mxu0 0.0
    %487 = vmatmul.mubr.f32.gmra.mxu0 %v397
    %v488 = vpop.f32.mrf.mxu0
    %v489 = vadd.f32 %v391, %v488
    %v490 = vpop.f32.mrf.mxu0
    %491 = vmatprep.mubr.f32.mxu0 0.0
    %492 = vmatmul.mubr.f32.gmra.mxu0 %v400
    %v493 = vpop.f32.mrf.mxu0
    %v494 = vadd.f32 %v391, %v493
    %v495 = vpop.f32.mrf.mxu0
    %496 = vmatprep.mubr.f32.mxu0 0.0
    %497 = vmatmul.mubr.f32.gmra.mxu0 %v403
    %v498 = vpop.f32.mrf.mxu0
    %v499 = vadd.f32 %v391, %v498
    %v500 = vpop.f32.mrf.mxu0
    %501 = vmatprep.mubr.f32.mxu0 0.0
    %502 = vmatmul.mubr.f32.gmra.mxu0 %v406
    %v503 = vpop.f32.mrf.mxu0
    %v504 = vadd.f32 %v391, %v503
    %v505 = vpop.f32.mrf.mxu0
    %506 = vmatprep.mubr.f32.mxu0 0.0
    %507 = vmatmul.mubr.f32.gmra.mxu0 %v409
    %v508 = vpop.f32.mrf.mxu0
    %v509 = vadd.f32 %v391, %v508
    %v510 = vpop.f32.mrf.mxu0
    %511 = vmatprep.mubr.f32.mxu0 0.0
    %512 = vmatmul.mubr.f32.gmra.mxu0 %v412
    %v513 = vpop.f32.mrf.mxu0
    %v514 = vadd.f32 %v391, %v513
    %v515 = vpop.f32.mrf.mxu0
    %516 = vmatprep.mubr.f32.mxu0 0.0
    %517 = vmatmul.mubr.f32.gmra.mxu0 %v415
    %v518 = vpop.f32.mrf.mxu0
    %v519 = vadd.f32 %v391, %v518
    %v520 = vpop.f32.mrf.mxu0
    %521 = vdwg.mxu0
    %v522 = vld [vmem:[%s12] sm:$0xff]
    %v523 = vld [vmem:[%s12 + $0x8] sm:$0xff]
    %v524 = vld [vmem:[%s12 + $0x10] sm:$0xff]
    %v525 = vld [vmem:[%s12 + $0x18] sm:$0xff]
    %v526 = vld [vmem:[%s12 + $0x20] sm:$0xff]
    %v527 = vld [vmem:[%s12 + $0x28] sm:$0xff]
    %v528 = vld [vmem:[%s12 + $0x30] sm:$0xff]
    %v529 = vld [vmem:[%s12 + $0x38] sm:$0xff]
    %vm530 = vcmask 64512
    %v532 = vsel %vm530, %v522, 0
    %v535 = vsel %vm530, %v523, 0
    %v538 = vsel %vm530, %v524, 0
    %v541 = vsel %vm530, %v525, 0
    %v544 = vsel %vm530, %v526, 0
    %v547 = vsel %vm530, %v527, 0
    %v550 = vsel %vm530, %v528, 0
    %v553 = vsel %vm530, %v529, 0
    %555 = vmatprep.subr.mxu0 0.0
    %556 = vmatpush1.msra.mxu0 0.0
    %557 = vmatprep.subr.mxu0 0.0
    %558 = vmatpush1.msra.mxu0 0.0
    %559 = vmatprep.subr.mxu0 0.0
    %560 = vmatpush1.msra.mxu0 0.0
    %561 = vmatprep.subr.mxu0 0.0
    %562 = vmatpush1.msra.mxu0 0.0
    %563 = vmatprep.subr.mxu0 0.0
    %564 = vmatpush1.msra.mxu0 0.0
    %565 = vmatprep.subr.mxu0 0.0
    %566 = vmatpush1.msra.mxu0 0.0
    %567 = vmatprep.subr.mxu0 0.0
    %568 = vmatpush1.msra.mxu0 0.0
    %569 = vmatprep.subr.mxu0 0.0
    %570 = vmatpush1.msra.mxu0 0.0
    %571 = vmatprep.subr.mxu0 0.0
    %572 = vmatpush1.msra.mxu0 0.0
    %573 = vmatprep.subr.mxu0 0.0
    %574 = vmatpush1.msra.mxu0 0.0
    %575 = vmatprep.subr.mxu0 0.0
    %576 = vmatpush1.msra.mxu0 0.0
    %577 = vmatprep.subr.mxu0 0.0
    %578 = vmatpush1.msra.mxu0 0.0
    %579 = vmatprep.subr.mxu0 0.0
    %580 = vmatpush1.msra.mxu0 0.0
    %581 = vmatprep.subr.mxu0 0.0
    %582 = vmatpush1.msra.mxu0 0.0
    %583 = vmatprep.subr.mxu0 0.0
    %584 = vmatpush1.msra.mxu0 0.0
    %585 = vmatprep.subr.mxu0 0.0
    %586 = vmatpush1.msra.mxu0 %v223
    %587 = vmatprep.subr.mxu0 0.0
    %588 = vmatpush2.msra.mxu0 0.0
    %589 = vmatprep.subr.mxu0 0.0
    %590 = vmatpush2.msra.mxu0 0.0
    %591 = vmatprep.subr.mxu0 0.0
    %592 = vmatpush2.msra.mxu0 0.0
    %593 = vmatprep.subr.mxu0 0.0
    %594 = vmatpush2.msra.mxu0 0.0
    %595 = vmatprep.subr.mxu0 0.0
    %596 = vmatpush2.msra.mxu0 0.0
    %597 = vmatprep.subr.mxu0 0.0
    %598 = vmatpush2.msra.mxu0 0.0
    %599 = vmatprep.subr.mxu0 0.0
    %600 = vmatpush2.msra.mxu0 0.0
    %601 = vmatprep.subr.mxu0 0.0
    %602 = vmatpush2.msra.mxu0 0.0
    %603 = vmatprep.subr.mxu0 0.0
    %604 = vmatpush2.msra.mxu0 0.0
    %605 = vmatprep.subr.mxu0 0.0
    %606 = vmatpush2.msra.mxu0 0.0
    %607 = vmatprep.subr.mxu0 0.0
    %608 = vmatpush2.msra.mxu0 0.0
    %609 = vmatprep.subr.mxu0 0.0
    %610 = vmatpush2.msra.mxu0 0.0
    %611 = vmatprep.subr.mxu0 0.0
    %612 = vmatpush2.msra.mxu0 0.0
    %613 = vmatprep.subr.mxu0 0.0
    %614 = vmatpush2.msra.mxu0 0.0
    %615 = vmatprep.subr.mxu0 0.0
    %616 = vmatpush2.msra.mxu0 0.0
    %617 = vmatprep.subr.mxu0 0.0
    %618 = vmatpush2.msra.mxu0 0.0
    %619 = vmatprep.mubr.f32.mxu0 0.0
    %620 = vmatmul.mubr.f32.gmra.mxu0 %v532
    %v621 = vpop.f32.mrf.mxu0
    %v622 = vadd.f32 0.0, %v621
    %v623 = vpop.f32.mrf.mxu0
    %624 = vmatprep.mubr.f32.mxu0 0.0
    %625 = vmatmul.mubr.f32.gmra.mxu0 %v535
    %v626 = vpop.f32.mrf.mxu0
    %v627 = vadd.f32 0.0, %v626
    %v628 = vpop.f32.mrf.mxu0
    %629 = vmatprep.mubr.f32.mxu0 0.0
    %630 = vmatmul.mubr.f32.gmra.mxu0 %v538
    %v631 = vpop.f32.mrf.mxu0
    %v632 = vadd.f32 0.0, %v631
    %v633 = vpop.f32.mrf.mxu0
    %634 = vmatprep.mubr.f32.mxu0 0.0
    %635 = vmatmul.mubr.f32.gmra.mxu0 %v541
    %v636 = vpop.f32.mrf.mxu0
    %v637 = vadd.f32 0.0, %v636
    %v638 = vpop.f32.mrf.mxu0
    %639 = vmatprep.mubr.f32.mxu0 0.0
    %640 = vmatmul.mubr.f32.gmra.mxu0 %v544
    %v641 = vpop.f32.mrf.mxu0
    %v642 = vadd.f32 0.0, %v641
    %v643 = vpop.f32.mrf.mxu0
    %644 = vmatprep.mubr.f32.mxu0 0.0
    %645 = vmatmul.mubr.f32.gmra.mxu0 %v547
    %v646 = vpop.f32.mrf.mxu0
    %v647 = vadd.f32 0.0, %v646
    %v648 = vpop.f32.mrf.mxu0
    %649 = vmatprep.mubr.f32.mxu0 0.0
    %650 = vmatmul.mubr.f32.gmra.mxu0 %v550
    %v651 = vpop.f32.mrf.mxu0
    %v652 = vadd.f32 0.0, %v651
    %v653 = vpop.f32.mrf.mxu0
    %654 = vmatprep.mubr.f32.mxu0 0.0
    %655 = vmatmul.mubr.f32.gmra.mxu0 %v553
    %v656 = vpop.f32.mrf.mxu0
    %v657 = vadd.f32 0.0, %v656
    %v658 = vpop.f32.mrf.mxu0
    %659 = vdwg.mxu0
    %v660 = vld [vmem:[%s14] sm:$0xff]
    %v661 = vld [vmem:[%s14 + $0x8] sm:$0xff]
    %v662 = vld [vmem:[%s14 + $0x10] sm:$0xff]
    %v663 = vld [vmem:[%s14 + $0x18] sm:$0xff]
    %v664 = vld [vmem:[%s14 + $0x20] sm:$0xff]
    %v665 = vld [vmem:[%s14 + $0x28] sm:$0xff]
    %v666 = vld [vmem:[%s14 + $0x30] sm:$0xff]
    %v667 = vld [vmem:[%s14 + $0x38] sm:$0xff]
    %669 = vrot.lane.b32.xlu0 %v223, 96
    %v670 = vpop.permute.xlu0 %669
    %v673 = vsel %vm530, %v660, 0
    %v676 = vsel %vm530, %v661, 0
    %v679 = vsel %vm530, %v662, 0
    %v682 = vsel %vm530, %v663, 0
    %v685 = vsel %vm530, %v664, 0
    %v688 = vsel %vm530, %v665, 0
    %v691 = vsel %vm530, %v666, 0
    %v694 = vsel %vm530, %v667, 0
    %696 = vmatprep.subr.mxu0 0.0
    %697 = vmatpush1.msra.mxu0 0.0
    %698 = vmatprep.subr.mxu0 0.0
    %699 = vmatpush1.msra.mxu0 0.0
    %700 = vmatprep.subr.mxu0 0.0
    %701 = vmatpush1.msra.mxu0 0.0
    %702 = vmatprep.subr.mxu0 0.0
    %703 = vmatpush1.msra.mxu0 0.0
    %704 = vmatprep.subr.mxu0 0.0
    %705 = vmatpush1.msra.mxu0 0.0
    %706 = vmatprep.subr.mxu0 0.0
    %707 = vmatpush1.msra.mxu0 0.0
    %708 = vmatprep.subr.mxu0 0.0
    %709 = vmatpush1.msra.mxu0 0.0
    %710 = vmatprep.subr.mxu0 0.0
    %711 = vmatpush1.msra.mxu0 0.0
    %712 = vmatprep.subr.mxu0 0.0
    %713 = vmatpush1.msra.mxu0 0.0
    %714 = vmatprep.subr.mxu0 0.0
    %715 = vmatpush1.msra.mxu0 0.0
    %716 = vmatprep.subr.mxu0 0.0
    %717 = vmatpush1.msra.mxu0 0.0
    %718 = vmatprep.subr.mxu0 0.0
    %719 = vmatpush1.msra.mxu0 0.0
    %720 = vmatprep.subr.mxu0 0.0
    %721 = vmatpush1.msra.mxu0 0.0
    %722 = vmatprep.subr.mxu0 0.0
    %723 = vmatpush1.msra.mxu0 0.0
    %724 = vmatprep.subr.mxu0 0.0
    %725 = vmatpush1.msra.mxu0 0.0
    %726 = vmatprep.subr.mxu0 0.0
    %727 = vmatpush1.msra.mxu0 %v670
    %728 = vmatprep.subr.mxu0 0.0
    %729 = vmatpush2.msra.mxu0 0.0
    %730 = vmatprep.subr.mxu0 0.0
    %731 = vmatpush2.msra.mxu0 0.0
    %732 = vmatprep.subr.mxu0 0.0
    %733 = vmatpush2.msra.mxu0 0.0
    %734 = vmatprep.subr.mxu0 0.0
    %735 = vmatpush2.msra.mxu0 0.0
    %736 = vmatprep.subr.mxu0 0.0
    %737 = vmatpush2.msra.mxu0 0.0
    %738 = vmatprep.subr.mxu0 0.0
    %739 = vmatpush2.msra.mxu0 0.0
    %740 = vmatprep.subr.mxu0 0.0
    %741 = vmatpush2.msra.mxu0 0.0
    %742 = vmatprep.subr.mxu0 0.0
    %743 = vmatpush2.msra.mxu0 0.0
    %744 = vmatprep.subr.mxu0 0.0
    %745 = vmatpush2.msra.mxu0 0.0
    %746 = vmatprep.subr.mxu0 0.0
    %747 = vmatpush2.msra.mxu0 0.0
    %748 = vmatprep.subr.mxu0 0.0
    %749 = vmatpush2.msra.mxu0 0.0
    %750 = vmatprep.subr.mxu0 0.0
    %751 = vmatpush2.msra.mxu0 0.0
    %752 = vmatprep.subr.mxu0 0.0
    %753 = vmatpush2.msra.mxu0 0.0
    %754 = vmatprep.subr.mxu0 0.0
    %755 = vmatpush2.msra.mxu0 0.0
    %756 = vmatprep.subr.mxu0 0.0
    %757 = vmatpush2.msra.mxu0 0.0
    %758 = vmatprep.subr.mxu0 0.0
    %759 = vmatpush2.msra.mxu0 0.0
    %760 = vmatprep.mubr.f32.mxu0 0.0
    %761 = vmatmul.mubr.f32.gmra.mxu0 %v673
    %v762 = vpop.f32.mrf.mxu0
    %v763 = vadd.f32 0.0, %v762
    %v764 = vpop.f32.mrf.mxu0
    %765 = vmatprep.mubr.f32.mxu0 0.0
    %766 = vmatmul.mubr.f32.gmra.mxu0 %v676
    %v767 = vpop.f32.mrf.mxu0
    %v768 = vadd.f32 0.0, %v767
    %v769 = vpop.f32.mrf.mxu0
    %770 = vmatprep.mubr.f32.mxu0 0.0
    %771 = vmatmul.mubr.f32.gmra.mxu0 %v679
    %v772 = vpop.f32.mrf.mxu0
    %v773 = vadd.f32 0.0, %v772
    %v774 = vpop.f32.mrf.mxu0
    %775 = vmatprep.mubr.f32.mxu0 0.0
    %776 = vmatmul.mubr.f32.gmra.mxu0 %v682
    %v777 = vpop.f32.mrf.mxu0
    %v778 = vadd.f32 0.0, %v777
    %v779 = vpop.f32.mrf.mxu0
    %780 = vmatprep.mubr.f32.mxu0 0.0
    %781 = vmatmul.mubr.f32.gmra.mxu0 %v685
    %v782 = vpop.f32.mrf.mxu0
    %v783 = vadd.f32 0.0, %v782
    %v784 = vpop.f32.mrf.mxu0
    %785 = vmatprep.mubr.f32.mxu0 0.0
    %786 = vmatmul.mubr.f32.gmra.mxu0 %v688
    %v787 = vpop.f32.mrf.mxu0
    %v788 = vadd.f32 0.0, %v787
    %v789 = vpop.f32.mrf.mxu0
    %790 = vmatprep.mubr.f32.mxu0 0.0
    %791 = vmatmul.mubr.f32.gmra.mxu0 %v691
    %v792 = vpop.f32.mrf.mxu0
    %v793 = vadd.f32 0.0, %v792
    %v794 = vpop.f32.mrf.mxu0
    %795 = vmatprep.mubr.f32.mxu0 0.0
    %796 = vmatmul.mubr.f32.gmra.mxu0 %v694
    %v797 = vpop.f32.mrf.mxu0
    %v798 = vadd.f32 0.0, %v797
    %v799 = vpop.f32.mrf.mxu0
    %800 = vdwg.mxu0
    %v801 = vmul.f32 %v622, %v763
    %v802 = vmul.f32 %v627, %v768
    %v803 = vmul.f32 %v632, %v773
    %v804 = vmul.f32 %v637, %v778
    %v805 = vmul.f32 %v642, %v783
    %v806 = vmul.f32 %v647, %v788
    %v807 = vmul.f32 %v652, %v793
    %v808 = vmul.f32 %v657, %v798
    %v809 = vld [vmem:[%s15] sm:$0xff]
    %v810 = vld [vmem:[%s15 + $0x8] sm:$0xff]
    %v811 = vld [vmem:[%s15 + $0x10] sm:$0xff]
    %v812 = vld [vmem:[%s15 + $0x18] sm:$0xff]
    %v814 = vsel %vm152, %v801, 0
    %v817 = vsel %vm152, %v802, 0
    %v820 = vsel %vm152, %v803, 0
    %v823 = vsel %vm152, %v804, 0
    %v826 = vsel %vm152, %v805, 0
    %v829 = vsel %vm152, %v806, 0
    %v832 = vsel %vm152, %v807, 0
    %v835 = vsel %vm152, %v808, 0
    %837 = vmatprep.subr.mxu0 0.0
    %838 = vmatpush1.msra.mxu0 0.0
    %839 = vmatprep.subr.mxu0 0.0
    %840 = vmatpush1.msra.mxu0 0.0
    %841 = vmatprep.subr.mxu0 0.0
    %842 = vmatpush1.msra.mxu0 0.0
    %843 = vmatprep.subr.mxu0 0.0
    %844 = vmatpush1.msra.mxu0 0.0
    %845 = vmatprep.subr.mxu0 0.0
    %846 = vmatpush1.msra.mxu0 0.0
    %847 = vmatprep.subr.mxu0 0.0
    %848 = vmatpush1.msra.mxu0 0.0
    %849 = vmatprep.subr.mxu0 0.0
    %850 = vmatpush1.msra.mxu0 0.0
    %851 = vmatprep.subr.mxu0 0.0
    %852 = vmatpush1.msra.mxu0 0.0
    %853 = vmatprep.subr.mxu0 0.0
    %854 = vmatpush1.msra.mxu0 0.0
    %855 = vmatprep.subr.mxu0 0.0
    %856 = vmatpush1.msra.mxu0 0.0
    %857 = vmatprep.subr.mxu0 0.0
    %858 = vmatpush1.msra.mxu0 0.0
    %859 = vmatprep.subr.mxu0 0.0
    %860 = vmatpush1.msra.mxu0 0.0
    %861 = vmatprep.subr.mxu0 0.0
    %862 = vmatpush1.msra.mxu0 %v812
    %863 = vmatprep.subr.mxu0 0.0
    %864 = vmatpush1.msra.mxu0 %v811
    %865 = vmatprep.subr.mxu0 0.0
    %866 = vmatpush1.msra.mxu0 %v810
    %867 = vmatprep.subr.mxu0 0.0
    %868 = vmatpush1.msra.mxu0 %v809
    %869 = vmatprep.subr.mxu0 0.0
    %870 = vmatpush2.msra.mxu0 0.0
    %871 = vmatprep.subr.mxu0 0.0
    %872 = vmatpush2.msra.mxu0 0.0
    %873 = vmatprep.subr.mxu0 0.0
    %874 = vmatpush2.msra.mxu0 0.0
    %875 = vmatprep.subr.mxu0 0.0
    %876 = vmatpush2.msra.mxu0 0.0
    %877 = vmatprep.subr.mxu0 0.0
    %878 = vmatpush2.msra.mxu0 0.0
    %879 = vmatprep.subr.mxu0 0.0
    %880 = vmatpush2.msra.mxu0 0.0
    %881 = vmatprep.subr.mxu0 0.0
    %882 = vmatpush2.msra.mxu0 0.0
    %883 = vmatprep.subr.mxu0 0.0
    %884 = vmatpush2.msra.mxu0 0.0
    %885 = vmatprep.subr.mxu0 0.0
    %886 = vmatpush2.msra.mxu0 0.0
    %887 = vmatprep.subr.mxu0 0.0
    %888 = vmatpush2.msra.mxu0 0.0
    %889 = vmatprep.subr.mxu0 0.0
    %890 = vmatpush2.msra.mxu0 0.0
    %891 = vmatprep.subr.mxu0 0.0
    %892 = vmatpush2.msra.mxu0 0.0
    %893 = vmatprep.subr.mxu0 0.0
    %894 = vmatpush2.msra.mxu0 0.0
    %895 = vmatprep.subr.mxu0 0.0
    %896 = vmatpush2.msra.mxu0 0.0
    %897 = vmatprep.subr.mxu0 0.0
    %898 = vmatpush2.msra.mxu0 0.0
    %899 = vmatprep.subr.mxu0 0.0
    %900 = vmatpush2.msra.mxu0 0.0
    %901 = vmatprep.mubr.f32.mxu0 0.0
    %902 = vmatmul.mubr.f32.gmra.mxu0 %v814
    %v903 = vpop.f32.mrf.mxu0
    %v904 = vadd.f32 0.0, %v903
    %v905 = vpop.f32.mrf.mxu0
    %906 = vmatprep.mubr.f32.mxu0 0.0
    %907 = vmatmul.mubr.f32.gmra.mxu0 %v817
    %v908 = vpop.f32.mrf.mxu0
    %v909 = vadd.f32 0.0, %v908
    %v910 = vpop.f32.mrf.mxu0
    %911 = vmatprep.mubr.f32.mxu0 0.0
    %912 = vmatmul.mubr.f32.gmra.mxu0 %v820
    %v913 = vpop.f32.mrf.mxu0
    %v914 = vadd.f32 0.0, %v913
    %v915 = vpop.f32.mrf.mxu0
    %916 = vmatprep.mubr.f32.mxu0 0.0
    %917 = vmatmul.mubr.f32.gmra.mxu0 %v823
    %v918 = vpop.f32.mrf.mxu0
    %v919 = vadd.f32 0.0, %v918
    %v920 = vpop.f32.mrf.mxu0
    %921 = vmatprep.mubr.f32.mxu0 0.0
    %922 = vmatmul.mubr.f32.gmra.mxu0 %v826
    %v923 = vpop.f32.mrf.mxu0
    %v924 = vadd.f32 0.0, %v923
    %v925 = vpop.f32.mrf.mxu0
    %926 = vmatprep.mubr.f32.mxu0 0.0
    %927 = vmatmul.mubr.f32.gmra.mxu0 %v829
    %v928 = vpop.f32.mrf.mxu0
    %v929 = vadd.f32 0.0, %v928
    %v930 = vpop.f32.mrf.mxu0
    %931 = vmatprep.mubr.f32.mxu0 0.0
    %932 = vmatmul.mubr.f32.gmra.mxu0 %v832
    %v933 = vpop.f32.mrf.mxu0
    %v934 = vadd.f32 0.0, %v933
    %v935 = vpop.f32.mrf.mxu0
    %936 = vmatprep.mubr.f32.mxu0 0.0
    %937 = vmatmul.mubr.f32.gmra.mxu0 %v835
    %v938 = vpop.f32.mrf.mxu0
    %v939 = vadd.f32 0.0, %v938
    %v940 = vpop.f32.mrf.mxu0
    %941 = vdwg.mxu0
    %v942 = vmul.f32 %v484, %v904
    %v943 = vmul.f32 %v489, %v909
    %v944 = vmul.f32 %v494, %v914
    %v945 = vmul.f32 %v499, %v919
    %v946 = vmul.f32 %v504, %v924
    %v947 = vmul.f32 %v509, %v929
    %v948 = vmul.f32 %v514, %v934
    %v949 = vmul.f32 %v519, %v939
    %vm950 = vcmask 31744
    %v951 = vsel %vm950, %v942, -inf
    %v952 = vsel %vm950, %v943, -inf
    %v953 = vsel %vm950, %v944, -inf
    %v954 = vsel %vm950, %v945, -inf
    %v955 = vsel %vm950, %v946, -inf
    %v956 = vmax.f32 %v951, %v955
    %v957 = vsel %vm950, %v947, -inf
    %v958 = vmax.f32 %v952, %v957
    %v959 = vsel %vm950, %v948, -inf
    %v960 = vmax.f32 %v953, %v959
    %v961 = vsel %vm950, %v949, -inf
    %v962 = vmax.f32 %v954, %v961
    %v963 = vmax.f32 %v956, %v958
    %v964 = vmax.f32 %v960, %v962
    %v965 = vmax.f32 %v963, %v964
    %v966 = vrot.slane %v965, 4
    %v967 = vmax.f32 %v965, %v966
    %v968 = vrot.slane %v967, 2
    %v969 = vmax.f32 %v967, %v968
    %v970 = vrot.slane %v969, 1
    %v971 = vmax.f32 %v969, %v970
    %v972 = vsub.f32 %v942, %v971
    %v973 = vsub.f32 %v943, %v971
    %v974 = vsub.f32 %v944, %v971
    %v975 = vsub.f32 %v945, %v971
    %v976 = vsub.f32 %v946, %v971
    %v977 = vsub.f32 %v947, %v971
    %v978 = vsub.f32 %v948, %v971
    %v979 = vsub.f32 %v949, %v971
    %v980 = vmul.f32 %v972, 1.442695
    %v981 = vpow.pop %v980
    %v982 = vmul.f32 %v973, 1.442695
    %v983 = vpow.pop %v982
    %v984 = vmul.f32 %v974, 1.442695
    %v985 = vpow.pop %v984
    %v986 = vmul.f32 %v975, 1.442695
    %v987 = vpow.pop %v986
    %v988 = vmul.f32 %v976, 1.442695
    %v989 = vpow.pop %v988
    %v990 = vmul.f32 %v977, 1.442695
    %v991 = vpow.pop %v990
    %v992 = vmul.f32 %v978, 1.442695
    %v993 = vpow.pop %v992
    %v994 = vmul.f32 %v979, 1.442695
    %v995 = vpow.pop %v994
    %v996 = vld [vmem:[%s13] sm:$0xff]
    %vm997 = vcmask 523264
    %v999 = vsel %vm997, %v996, 0
    %1001 = vmatprep.subr.mxu0 0.0
    %1002 = vmatpush1.msra.mxu0 0.0
    %1003 = vmatprep.subr.mxu0 0.0
    %1004 = vmatpush1.msra.mxu0 0.0
    %1005 = vmatprep.subr.mxu0 0.0
    %1006 = vmatpush1.msra.mxu0 0.0
    %1007 = vmatprep.subr.mxu0 0.0
    %1008 = vmatpush1.msra.mxu0 0.0
    %1009 = vmatprep.subr.mxu0 0.0
    %1010 = vmatpush1.msra.mxu0 0.0
    %1011 = vmatprep.subr.mxu0 0.0
    %1012 = vmatpush1.msra.mxu0 0.0
    %1013 = vmatprep.subr.mxu0 0.0
    %1014 = vmatpush1.msra.mxu0 0.0
    %1015 = vmatprep.subr.mxu0 0.0
    %1016 = vmatpush1.msra.mxu0 0.0
    %1017 = vmatprep.subr.mxu0 0.0
    %1018 = vmatpush1.msra.mxu0 %v995
    %1019 = vmatprep.subr.mxu0 0.0
    %1020 = vmatpush1.msra.mxu0 %v993
    %1021 = vmatprep.subr.mxu0 0.0
    %1022 = vmatpush1.msra.mxu0 %v991
    %1023 = vmatprep.subr.mxu0 0.0
    %1024 = vmatpush1.msra.mxu0 %v989
    %1025 = vmatprep.subr.mxu0 0.0
    %1026 = vmatpush1.msra.mxu0 %v987
    %1027 = vmatprep.subr.mxu0 0.0
    %1028 = vmatpush1.msra.mxu0 %v985
    %1029 = vmatprep.subr.mxu0 0.0
    %1030 = vmatpush1.msra.mxu0 %v983
    %1031 = vmatprep.subr.mxu0 0.0
    %1032 = vmatpush1.msra.mxu0 %v981
    %1033 = vmatprep.subr.mxu0 0.0
    %1034 = vmatpush2.msra.mxu0 0.0
    %1035 = vmatprep.subr.mxu0 0.0
    %1036 = vmatpush2.msra.mxu0 0.0
    %1037 = vmatprep.subr.mxu0 0.0
    %1038 = vmatpush2.msra.mxu0 0.0
    %1039 = vmatprep.subr.mxu0 0.0
    %1040 = vmatpush2.msra.mxu0 0.0
    %1041 = vmatprep.subr.mxu0 0.0
    %1042 = vmatpush2.msra.mxu0 0.0
    %1043 = vmatprep.subr.mxu0 0.0
    %1044 = vmatpush2.msra.mxu0 0.0
    %1045 = vmatprep.subr.mxu0 0.0
    %1046 = vmatpush2.msra.mxu0 0.0
    %1047 = vmatprep.subr.mxu0 0.0
    %1048 = vmatpush2.msra.mxu0 0.0
    %1049 = vmatprep.subr.mxu0 0.0
    %1050 = vmatpush2.msra.mxu0 0.0
    %1051 = vmatprep.subr.mxu0 0.0
    %1052 = vmatpush2.msra.mxu0 0.0
    %1053 = vmatprep.subr.mxu0 0.0
    %1054 = vmatpush2.msra.mxu0 0.0
    %1055 = vmatprep.subr.mxu0 0.0
    %1056 = vmatpush2.msra.mxu0 0.0
    %1057 = vmatprep.subr.mxu0 0.0
    %1058 = vmatpush2.msra.mxu0 0.0
    %1059 = vmatprep.subr.mxu0 0.0
    %1060 = vmatpush2.msra.mxu0 0.0
    %1061 = vmatprep.subr.mxu0 0.0
    %1062 = vmatpush2.msra.mxu0 0.0
    %1063 = vmatprep.subr.mxu0 0.0
    %1064 = vmatpush2.msra.mxu0 0.0
    %1065 = vmatprep.mubr.f32.mxu0 0.0
    %1066 = vmatmul.mubr.f32.gmra.mxu0 %v999
    %v1067 = vpop.f32.mrf.mxu0
    %v1068 = vadd.f32 0.0, %v1067
    %v1069 = vpop.f32.mrf.mxu0
    %1070 = vdwg.mxu0
    %1071 = vmatprep.subr.mxu0 0.0
    %1072 = vmatpush1.msra.mxu0 0.0
    %1073 = vmatprep.subr.mxu0 0.0
    %1074 = vmatpush1.msra.mxu0 0.0
    %1075 = vmatprep.subr.mxu0 0.0
    %1076 = vmatpush1.msra.mxu0 0.0
    %1077 = vmatprep.subr.mxu0 0.0
    %1078 = vmatpush1.msra.mxu0 0.0
    %1079 = vmatprep.subr.mxu0 0.0
    %1080 = vmatpush1.msra.mxu0 0.0
    %1081 = vmatprep.subr.mxu0 0.0
    %1082 = vmatpush1.msra.mxu0 0.0
    %1083 = vmatprep.subr.mxu0 0.0
    %1084 = vmatpush1.msra.mxu0 0.0
    %1085 = vmatprep.subr.mxu0 0.0
    %1086 = vmatpush1.msra.mxu0 0.0
    %1087 = vmatprep.subr.mxu0 0.0
    %1088 = vmatpush1.msra.mxu0 0.0
    %1089 = vmatprep.subr.mxu0 0.0
    %1090 = vmatpush1.msra.mxu0 0.0
    %1091 = vmatprep.subr.mxu0 0.0
    %1092 = vmatpush1.msra.mxu0 0.0
    %1093 = vmatprep.subr.mxu0 0.0
    %1094 = vmatpush1.msra.mxu0 0.0
    %1095 = vmatprep.subr.mxu0 0.0
    %1096 = vmatpush1.msra.mxu0 0.0
    %1097 = vmatprep.subr.mxu0 0.0
    %1098 = vmatpush1.msra.mxu0 0.0
    %1099 = vmatprep.subr.mxu0 0.0
    %1100 = vmatpush1.msra.mxu0 0.0
    %1101 = vmatprep.subr.mxu0 0.0
    %1102 = vmatpush1.msra.mxu0 %v1068
    %1103 = vmatprep.subr.mxu0 0.0
    %1104 = vmatpush2.msra.mxu0 0.0
    %1105 = vmatprep.subr.mxu0 0.0
    %1106 = vmatpush2.msra.mxu0 0.0
    %1107 = vmatprep.subr.mxu0 0.0
    %1108 = vmatpush2.msra.mxu0 0.0
    %1109 = vmatprep.subr.mxu0 0.0
    %1110 = vmatpush2.msra.mxu0 0.0
    %1111 = vmatprep.subr.mxu0 0.0
    %1112 = vmatpush2.msra.mxu0 0.0
    %1113 = vmatprep.subr.mxu0 0.0
    %1114 = vmatpush2.msra.mxu0 0.0
    %1115 = vmatprep.subr.mxu0 0.0
    %1116 = vmatpush2.msra.mxu0 0.0
    %1117 = vmatprep.subr.mxu0 0.0
    %1118 = vmatpush2.msra.mxu0 0.0
    %1119 = vmatprep.subr.mxu0 0.0
    %1120 = vmatpush2.msra.mxu0 0.0
    %1121 = vmatprep.subr.mxu0 0.0
    %1122 = vmatpush2.msra.mxu0 0.0
    %1123 = vmatprep.subr.mxu0 0.0
    %1124 = vmatpush2.msra.mxu0 0.0
    %1125 = vmatprep.subr.mxu0 0.0
    %1126 = vmatpush2.msra.mxu0 0.0
    %1127 = vmatprep.subr.mxu0 0.0
    %1128 = vmatpush2.msra.mxu0 0.0
    %1129 = vmatprep.subr.mxu0 0.0
    %1130 = vmatpush2.msra.mxu0 0.0
    %1131 = vmatprep.subr.mxu0 0.0
    %1132 = vmatpush2.msra.mxu0 0.0
    %1133 = vmatprep.subr.mxu0 0.0
    %1134 = vmatpush2.msra.mxu0 0.0
    %1135 = vmatprep.mubr.f32.mxu0 0.0
    %1136 = vmatmul.mubr.f32.gmra.mxu0 %v532
    %v1137 = vpop.f32.mrf.mxu0
    %v1138 = vadd.f32 0.0, %v1137
    %v1139 = vpop.f32.mrf.mxu0
    %1140 = vmatprep.mubr.f32.mxu0 0.0
    %1141 = vmatmul.mubr.f32.gmra.mxu0 %v535
    %v1142 = vpop.f32.mrf.mxu0
    %v1143 = vadd.f32 0.0, %v1142
    %v1144 = vpop.f32.mrf.mxu0
    %1145 = vmatprep.mubr.f32.mxu0 0.0
    %1146 = vmatmul.mubr.f32.gmra.mxu0 %v538
    %v1147 = vpop.f32.mrf.mxu0
    %v1148 = vadd.f32 0.0, %v1147
    %v1149 = vpop.f32.mrf.mxu0
    %1150 = vmatprep.mubr.f32.mxu0 0.0
    %1151 = vmatmul.mubr.f32.gmra.mxu0 %v541
    %v1152 = vpop.f32.mrf.mxu0
    %v1153 = vadd.f32 0.0, %v1152
    %v1154 = vpop.f32.mrf.mxu0
    %1155 = vmatprep.mubr.f32.mxu0 0.0
    %1156 = vmatmul.mubr.f32.gmra.mxu0 %v544
    %v1157 = vpop.f32.mrf.mxu0
    %v1158 = vadd.f32 0.0, %v1157
    %v1159 = vpop.f32.mrf.mxu0
    %1160 = vmatprep.mubr.f32.mxu0 0.0
    %1161 = vmatmul.mubr.f32.gmra.mxu0 %v547
    %v1162 = vpop.f32.mrf.mxu0
    %v1163 = vadd.f32 0.0, %v1162
    %v1164 = vpop.f32.mrf.mxu0
    %1165 = vmatprep.mubr.f32.mxu0 0.0
    %1166 = vmatmul.mubr.f32.gmra.mxu0 %v550
    %v1167 = vpop.f32.mrf.mxu0
    %v1168 = vadd.f32 0.0, %v1167
    %v1169 = vpop.f32.mrf.mxu0
    %1170 = vmatprep.mubr.f32.mxu0 0.0
    %1171 = vmatmul.mubr.f32.gmra.mxu0 %v553
    %v1172 = vpop.f32.mrf.mxu0
    %v1173 = vadd.f32 0.0, %v1172
    %v1174 = vpop.f32.mrf.mxu0
    %1175 = vdwg.mxu0
    %v1176 = vrcp.pop %v1138
    %v1177 = vrcp.pop %v1143
    %v1178 = vrcp.pop %v1148
    %v1179 = vrcp.pop %v1153
    %v1180 = vrcp.pop %v1158
    %v1181 = vrcp.pop %v1163
    %v1182 = vrcp.pop %v1168
    %v1183 = vrcp.pop %v1173
    %v1184 = vmul.f32 %v981, %v1176
    %v1185 = vmul.f32 %v983, %v1177
    %v1186 = vmul.f32 %v985, %v1178
    %v1187 = vmul.f32 %v987, %v1179
    %v1188 = vmul.f32 %v989, %v1180
    %v1189 = vmul.f32 %v991, %v1181
    %v1190 = vmul.f32 %v993, %v1182
    %v1191 = vmul.f32 %v995, %v1183
    %v1192 = vld [vmem:[%s16] sm:$0xf]
    %v1194 = vsel %vm950, %v1184, 0
    %v1197 = vsel %vm950, %v1185, 0
    %v1200 = vsel %vm950, %v1186, 0
    %v1203 = vsel %vm950, %v1187, 0
    %v1206 = vsel %vm950, %v1188, 0
    %v1209 = vsel %vm950, %v1189, 0
    %v1212 = vsel %vm950, %v1190, 0
    %v1215 = vsel %vm950, %v1191, 0
    %vm1217 = vcmask 1043456
    %v1219 = vsel %vm1217, %v1192, 0
    %1221 = vmatprep.subr.mxu0 0.0
    %1222 = vmatpush1.msra.mxu0 0.0
    %1223 = vmatprep.subr.mxu0 0.0
    %1224 = vmatpush1.msra.mxu0 0.0
    %1225 = vmatprep.subr.mxu0 0.0
    %1226 = vmatpush1.msra.mxu0 0.0
    %1227 = vmatprep.subr.mxu0 0.0
    %1228 = vmatpush1.msra.mxu0 0.0
    %1229 = vmatprep.subr.mxu0 0.0
    %1230 = vmatpush1.msra.mxu0 0.0
    %1231 = vmatprep.subr.mxu0 0.0
    %1232 = vmatpush1.msra.mxu0 0.0
    %1233 = vmatprep.subr.mxu0 0.0
    %1234 = vmatpush1.msra.mxu0 0.0
    %1235 = vmatprep.subr.mxu0 0.0
    %1236 = vmatpush1.msra.mxu0 0.0
    %1237 = vmatprep.subr.mxu0 0.0
    %1238 = vmatpush1.msra.mxu0 0.0
    %1239 = vmatprep.subr.mxu0 0.0
    %1240 = vmatpush1.msra.mxu0 0.0
    %1241 = vmatprep.subr.mxu0 0.0
    %1242 = vmatpush1.msra.mxu0 0.0
    %1243 = vmatprep.subr.mxu0 0.0
    %1244 = vmatpush1.msra.mxu0 0.0
    %1245 = vmatprep.subr.mxu0 0.0
    %1246 = vmatpush1.msra.mxu0 0.0
    %1247 = vmatprep.subr.mxu0 0.0
    %1248 = vmatpush1.msra.mxu0 0.0
    %1249 = vmatprep.subr.mxu0 0.0
    %1250 = vmatpush1.msra.mxu0 0.0
    %1251 = vmatprep.subr.mxu0 0.0
    %1252 = vmatpush1.msra.mxu0 %v1219
    %1253 = vmatprep.subr.mxu0 0.0
    %1254 = vmatpush2.msra.mxu0 0.0
    %1255 = vmatprep.subr.mxu0 0.0
    %1256 = vmatpush2.msra.mxu0 0.0
    %1257 = vmatprep.subr.mxu0 0.0
    %1258 = vmatpush2.msra.mxu0 0.0
    %1259 = vmatprep.subr.mxu0 0.0
    %1260 = vmatpush2.msra.mxu0 0.0
    %1261 = vmatprep.subr.mxu0 0.0
    %1262 = vmatpush2.msra.mxu0 0.0
    %1263 = vmatprep.subr.mxu0 0.0
    %1264 = vmatpush2.msra.mxu0 0.0
    %1265 = vmatprep.subr.mxu0 0.0
    %1266 = vmatpush2.msra.mxu0 0.0
    %1267 = vmatprep.subr.mxu0 0.0
    %1268 = vmatpush2.msra.mxu0 0.0
    %1269 = vmatprep.subr.mxu0 0.0
    %1270 = vmatpush2.msra.mxu0 0.0
    %1271 = vmatprep.subr.mxu0 0.0
    %1272 = vmatpush2.msra.mxu0 0.0
    %1273 = vmatprep.subr.mxu0 0.0
    %1274 = vmatpush2.msra.mxu0 0.0
    %1275 = vmatprep.subr.mxu0 0.0
    %1276 = vmatpush2.msra.mxu0 0.0
    %1277 = vmatprep.subr.mxu0 0.0
    %1278 = vmatpush2.msra.mxu0 0.0
    %1279 = vmatprep.subr.mxu0 0.0
    %1280 = vmatpush2.msra.mxu0 0.0
    %1281 = vmatprep.subr.mxu0 0.0
    %1282 = vmatpush2.msra.mxu0 0.0
    %1283 = vmatprep.subr.mxu0 0.0
    %1284 = vmatpush2.msra.mxu0 0.0
    %1285 = vmatprep.mubr.f32.mxu0 0.0
    %1286 = vmatmul.mubr.f32.gmra.mxu0 %v1194
    %v1287 = vpop.f32.mrf.mxu0
    %v1288 = vadd.f32 0.0, %v1287
    %v1289 = vpop.f32.mrf.mxu0
    %1290 = vmatprep.mubr.f32.mxu0 0.0
    %1291 = vmatmul.mubr.f32.gmra.mxu0 %v1197
    %v1292 = vpop.f32.mrf.mxu0
    %v1293 = vadd.f32 0.0, %v1292
    %v1294 = vpop.f32.mrf.mxu0
    %1295 = vmatprep.mubr.f32.mxu0 0.0
    %1296 = vmatmul.mubr.f32.gmra.mxu0 %v1200
    %v1297 = vpop.f32.mrf.mxu0
    %v1298 = vadd.f32 0.0, %v1297
    %v1299 = vpop.f32.mrf.mxu0
    %1300 = vmatprep.mubr.f32.mxu0 0.0
    %1301 = vmatmul.mubr.f32.gmra.mxu0 %v1203
    %v1302 = vpop.f32.mrf.mxu0
    %v1303 = vadd.f32 0.0, %v1302
    %v1304 = vpop.f32.mrf.mxu0
    %1305 = vmatprep.mubr.f32.mxu0 0.0
    %1306 = vmatmul.mubr.f32.gmra.mxu0 %v1206
    %v1307 = vpop.f32.mrf.mxu0
    %v1308 = vadd.f32 0.0, %v1307
    %v1309 = vpop.f32.mrf.mxu0
    %1310 = vmatprep.mubr.f32.mxu0 0.0
    %1311 = vmatmul.mubr.f32.gmra.mxu0 %v1209
    %v1312 = vpop.f32.mrf.mxu0
    %v1313 = vadd.f32 0.0, %v1312
    %v1314 = vpop.f32.mrf.mxu0
    %1315 = vmatprep.mubr.f32.mxu0 0.0
    %1316 = vmatmul.mubr.f32.gmra.mxu0 %v1212
    %v1317 = vpop.f32.mrf.mxu0
    %v1318 = vadd.f32 0.0, %v1317
    %v1319 = vpop.f32.mrf.mxu0
    %1320 = vmatprep.mubr.f32.mxu0 0.0
    %1321 = vmatmul.mubr.f32.gmra.mxu0 %v1215
    %v1322 = vpop.f32.mrf.mxu0
    %v1323 = vadd.f32 0.0, %v1322
    %v1324 = vpop.f32.mrf.mxu0
    %1325 = vdwg.mxu0
    %v1326 = vld [vmem:[%s10] sm:$0xff]
    %v1327 = vld [vmem:[%s10 + $0x8] sm:$0xff]
    %v1328 = vld [vmem:[%s10 + $0x10] sm:$0xff]
    %v1329 = vld [vmem:[%s10 + $0x18] sm:$0xff]
    %1330 = vmatprep.subr.mxu0 0.0
    %1331 = vmatpush1.msra.mxu0 0.0
    %1332 = vmatprep.subr.mxu0 0.0
    %1333 = vmatpush1.msra.mxu0 0.0
    %1334 = vmatprep.subr.mxu0 0.0
    %1335 = vmatpush1.msra.mxu0 0.0
    %1336 = vmatprep.subr.mxu0 0.0
    %1337 = vmatpush1.msra.mxu0 0.0
    %1338 = vmatprep.subr.mxu0 0.0
    %1339 = vmatpush1.msra.mxu0 0.0
    %1340 = vmatprep.subr.mxu0 0.0
    %1341 = vmatpush1.msra.mxu0 0.0
    %1342 = vmatprep.subr.mxu0 0.0
    %1343 = vmatpush1.msra.mxu0 0.0
    %1344 = vmatprep.subr.mxu0 0.0
    %1345 = vmatpush1.msra.mxu0 0.0
    %1346 = vmatprep.subr.mxu0 0.0
    %1347 = vmatpush1.msra.mxu0 0.0
    %1348 = vmatprep.subr.mxu0 0.0
    %1349 = vmatpush1.msra.mxu0 0.0
    %1350 = vmatprep.subr.mxu0 0.0
    %1351 = vmatpush1.msra.mxu0 0.0
    %1352 = vmatprep.subr.mxu0 0.0
    %1353 = vmatpush1.msra.mxu0 0.0
    %1354 = vmatprep.subr.mxu0 0.0
    %1355 = vmatpush1.msra.mxu0 %v1329
    %1356 = vmatprep.subr.mxu0 0.0
    %1357 = vmatpush1.msra.mxu0 %v1328
    %1358 = vmatprep.subr.mxu0 0.0
    %1359 = vmatpush1.msra.mxu0 %v1327
    %1360 = vmatprep.subr.mxu0 0.0
    %1361 = vmatpush1.msra.mxu0 %v1326
    %1362 = vmatprep.subr.mxu0 0.0
    %1363 = vmatpush2.msra.mxu0 0.0
    %1364 = vmatprep.subr.mxu0 0.0
    %1365 = vmatpush2.msra.mxu0 0.0
    %1366 = vmatprep.subr.mxu0 0.0
    %1367 = vmatpush2.msra.mxu0 0.0
    %1368 = vmatprep.subr.mxu0 0.0
    %1369 = vmatpush2.msra.mxu0 0.0
    %1370 = vmatprep.subr.mxu0 0.0
    %1371 = vmatpush2.msra.mxu0 0.0
    %1372 = vmatprep.subr.mxu0 0.0
    %1373 = vmatpush2.msra.mxu0 0.0
    %1374 = vmatprep.subr.mxu0 0.0
    %1375 = vmatpush2.msra.mxu0 0.0
    %1376 = vmatprep.subr.mxu0 0.0
    %1377 = vmatpush2.msra.mxu0 0.0
    %1378 = vmatprep.subr.mxu0 0.0
    %1379 = vmatpush2.msra.mxu0 0.0
    %1380 = vmatprep.subr.mxu0 0.0
    %1381 = vmatpush2.msra.mxu0 0.0
    %1382 = vmatprep.subr.mxu0 0.0
    %1383 = vmatpush2.msra.mxu0 0.0
    %1384 = vmatprep.subr.mxu0 0.0
    %1385 = vmatpush2.msra.mxu0 0.0
    %1386 = vmatprep.subr.mxu0 0.0
    %1387 = vmatpush2.msra.mxu0 0.0
    %1388 = vmatprep.subr.mxu0 0.0
    %1389 = vmatpush2.msra.mxu0 0.0
    %1390 = vmatprep.subr.mxu0 0.0
    %1391 = vmatpush2.msra.mxu0 0.0
    %1392 = vmatprep.subr.mxu0 0.0
    %1393 = vmatpush2.msra.mxu0 0.0
    %1394 = vmatprep.mubr.f32.mxu0 0.0
    %1395 = vmatmul.mubr.f32.gmra.mxu0 %v154
    %v1396 = vpop.f32.mrf.mxu0
    %v1397 = vadd.f32 0.0, %v1396
    %v1398 = vpop.f32.mrf.mxu0
    %1399 = vdwg.mxu0
    %1400 = vmatprep.subr.mxu0 0.0
    %1401 = vmatpush1.msra.mxu0 0.0
    %1402 = vmatprep.subr.mxu0 0.0
    %1403 = vmatpush1.msra.mxu0 0.0
    %1404 = vmatprep.subr.mxu0 0.0
    %1405 = vmatpush1.msra.mxu0 0.0
    %1406 = vmatprep.subr.mxu0 0.0
    %1407 = vmatpush1.msra.mxu0 0.0
    %1408 = vmatprep.subr.mxu0 0.0
    %1409 = vmatpush1.msra.mxu0 0.0
    %1410 = vmatprep.subr.mxu0 0.0
    %1411 = vmatpush1.msra.mxu0 0.0
    %1412 = vmatprep.subr.mxu0 0.0
    %1413 = vmatpush1.msra.mxu0 0.0
    %1414 = vmatprep.subr.mxu0 0.0
    %1415 = vmatpush1.msra.mxu0 0.0
    %1416 = vmatprep.subr.mxu0 0.0
    %1417 = vmatpush1.msra.mxu0 0.0
    %1418 = vmatprep.subr.mxu0 0.0
    %1419 = vmatpush1.msra.mxu0 0.0
    %1420 = vmatprep.subr.mxu0 0.0
    %1421 = vmatpush1.msra.mxu0 0.0
    %1422 = vmatprep.subr.mxu0 0.0
    %1423 = vmatpush1.msra.mxu0 0.0
    %1424 = vmatprep.subr.mxu0 0.0
    %1425 = vmatpush1.msra.mxu0 0.0
    %1426 = vmatprep.subr.mxu0 0.0
    %1427 = vmatpush1.msra.mxu0 0.0
    %1428 = vmatprep.subr.mxu0 0.0
    %1429 = vmatpush1.msra.mxu0 0.0
    %1430 = vmatprep.subr.mxu0 0.0
    %1431 = vmatpush1.msra.mxu0 %v1397
    %1432 = vmatprep.subr.mxu0 0.0
    %1433 = vmatpush2.msra.mxu0 0.0
    %1434 = vmatprep.subr.mxu0 0.0
    %1435 = vmatpush2.msra.mxu0 0.0
    %1436 = vmatprep.subr.mxu0 0.0
    %1437 = vmatpush2.msra.mxu0 0.0
    %1438 = vmatprep.subr.mxu0 0.0
    %1439 = vmatpush2.msra.mxu0 0.0
    %1440 = vmatprep.subr.mxu0 0.0
    %1441 = vmatpush2.msra.mxu0 0.0
    %1442 = vmatprep.subr.mxu0 0.0
    %1443 = vmatpush2.msra.mxu0 0.0
    %1444 = vmatprep.subr.mxu0 0.0
    %1445 = vmatpush2.msra.mxu0 0.0
    %1446 = vmatprep.subr.mxu0 0.0
    %1447 = vmatpush2.msra.mxu0 0.0
    %1448 = vmatprep.subr.mxu0 0.0
    %1449 = vmatpush2.msra.mxu0 0.0
    %1450 = vmatprep.subr.mxu0 0.0
    %1451 = vmatpush2.msra.mxu0 0.0
    %1452 = vmatprep.subr.mxu0 0.0
    %1453 = vmatpush2.msra.mxu0 0.0
    %1454 = vmatprep.subr.mxu0 0.0
    %1455 = vmatpush2.msra.mxu0 0.0
    %1456 = vmatprep.subr.mxu0 0.0
    %1457 = vmatpush2.msra.mxu0 0.0
    %1458 = vmatprep.subr.mxu0 0.0
    %1459 = vmatpush2.msra.mxu0 0.0
    %1460 = vmatprep.subr.mxu0 0.0
    %1461 = vmatpush2.msra.mxu0 0.0
    %1462 = vmatprep.subr.mxu0 0.0
    %1463 = vmatpush2.msra.mxu0 0.0
    %1464 = vmatprep.mubr.f32.mxu0 0.0
    %1465 = vmatmul.mubr.f32.gmra.mxu0 %v673
    %v1466 = vpop.f32.mrf.mxu0
    %v1467 = vadd.f32 0.0, %v1466
    %v1468 = vpop.f32.mrf.mxu0
    %1469 = vmatprep.mubr.f32.mxu0 0.0
    %1470 = vmatmul.mubr.f32.gmra.mxu0 %v676
    %v1471 = vpop.f32.mrf.mxu0
    %v1472 = vadd.f32 0.0, %v1471
    %v1473 = vpop.f32.mrf.mxu0
    %1474 = vmatprep.mubr.f32.mxu0 0.0
    %1475 = vmatmul.mubr.f32.gmra.mxu0 %v679
    %v1476 = vpop.f32.mrf.mxu0
    %v1477 = vadd.f32 0.0, %v1476
    %v1478 = vpop.f32.mrf.mxu0
    %1479 = vmatprep.mubr.f32.mxu0 0.0
    %1480 = vmatmul.mubr.f32.gmra.mxu0 %v682
    %v1481 = vpop.f32.mrf.mxu0
    %v1482 = vadd.f32 0.0, %v1481
    %v1483 = vpop.f32.mrf.mxu0
    %1484 = vmatprep.mubr.f32.mxu0 0.0
    %1485 = vmatmul.mubr.f32.gmra.mxu0 %v685
    %v1486 = vpop.f32.mrf.mxu0
    %v1487 = vadd.f32 0.0, %v1486
    %v1488 = vpop.f32.mrf.mxu0
    %1489 = vmatprep.mubr.f32.mxu0 0.0
    %1490 = vmatmul.mubr.f32.gmra.mxu0 %v688
    %v1491 = vpop.f32.mrf.mxu0
    %v1492 = vadd.f32 0.0, %v1491
    %v1493 = vpop.f32.mrf.mxu0
    %1494 = vmatprep.mubr.f32.mxu0 0.0
    %1495 = vmatmul.mubr.f32.gmra.mxu0 %v691
    %v1496 = vpop.f32.mrf.mxu0
    %v1497 = vadd.f32 0.0, %v1496
    %v1498 = vpop.f32.mrf.mxu0
    %1499 = vmatprep.mubr.f32.mxu0 0.0
    %1500 = vmatmul.mubr.f32.gmra.mxu0 %v694
    %v1501 = vpop.f32.mrf.mxu0
    %v1502 = vadd.f32 0.0, %v1501
    %v1503 = vpop.f32.mrf.mxu0
    %1504 = vdwg.mxu0
    %v1505 = vmul.f32 %v1288, %v1467
    %v1506 = vmul.f32 %v1293, %v1472
    %v1507 = vmul.f32 %v1298, %v1477
    %v1508 = vmul.f32 %v1303, %v1482
    %v1509 = vmul.f32 %v1308, %v1487
    %v1510 = vmul.f32 %v1313, %v1492
    %v1511 = vmul.f32 %v1318, %v1497
    %v1512 = vmul.f32 %v1323, %v1502
    %v1513 = vld [vmem:[%s11] sm:$0x1]
    %v1515 = vlaneseq
    %v1516 = vshrl.u32 %v1515, 7
    %v1517 = vsub.s32 0, %v1516
    %v1518 = vrot.slane %v1513, %v1517
    %1520 = vmatprep.subr.mxu0 0.0
    %1521 = vmatpush1.msra.mxu0 0.0
    %1522 = vmatprep.subr.mxu0 0.0
    %1523 = vmatpush1.msra.mxu0 0.0
    %1524 = vmatprep.subr.mxu0 0.0
    %1525 = vmatpush1.msra.mxu0 0.0
    %1526 = vmatprep.subr.mxu0 0.0
    %1527 = vmatpush1.msra.mxu0 0.0
    %1528 = vmatprep.subr.mxu0 0.0
    %1529 = vmatpush1.msra.mxu0 0.0
    %1530 = vmatprep.subr.mxu0 0.0
    %1531 = vmatpush1.msra.mxu0 0.0
    %1532 = vmatprep.subr.mxu0 0.0
    %1533 = vmatpush1.msra.mxu0 0.0
    %1534 = vmatprep.subr.mxu0 0.0
    %1535 = vmatpush1.msra.mxu0 0.0
    %1536 = vmatprep.subr.mxu0 0.0
    %1537 = vmatpush1.msra.mxu0 %v1512
    %1538 = vmatprep.subr.mxu0 0.0
    %1539 = vmatpush1.msra.mxu0 %v1511
    %1540 = vmatprep.subr.mxu0 0.0
    %1541 = vmatpush1.msra.mxu0 %v1510
    %1542 = vmatprep.subr.mxu0 0.0
    %1543 = vmatpush1.msra.mxu0 %v1509
    %1544 = vmatprep.subr.mxu0 0.0
    %1545 = vmatpush1.msra.mxu0 %v1508
    %1546 = vmatprep.subr.mxu0 0.0
    %1547 = vmatpush1.msra.mxu0 %v1507
    %1548 = vmatprep.subr.mxu0 0.0
    %1549 = vmatpush1.msra.mxu0 %v1506
    %1550 = vmatprep.subr.mxu0 0.0
    %1551 = vmatpush1.msra.mxu0 %v1505
    %1552 = vmatprep.subr.mxu0 0.0
    %1553 = vmatpush2.msra.mxu0 0.0
    %1554 = vmatprep.subr.mxu0 0.0
    %1555 = vmatpush2.msra.mxu0 0.0
    %1556 = vmatprep.subr.mxu0 0.0
    %1557 = vmatpush2.msra.mxu0 0.0
    %1558 = vmatprep.subr.mxu0 0.0
    %1559 = vmatpush2.msra.mxu0 0.0
    %1560 = vmatprep.subr.mxu0 0.0
    %1561 = vmatpush2.msra.mxu0 0.0
    %1562 = vmatprep.subr.mxu0 0.0
    %1563 = vmatpush2.msra.mxu0 0.0
    %1564 = vmatprep.subr.mxu0 0.0
    %1565 = vmatpush2.msra.mxu0 0.0
    %1566 = vmatprep.subr.mxu0 0.0
    %1567 = vmatpush2.msra.mxu0 0.0
    %1568 = vmatprep.subr.mxu0 0.0
    %1569 = vmatpush2.msra.mxu0 0.0
    %1570 = vmatprep.subr.mxu0 0.0
    %1571 = vmatpush2.msra.mxu0 0.0
    %1572 = vmatprep.subr.mxu0 0.0
    %1573 = vmatpush2.msra.mxu0 0.0
    %1574 = vmatprep.subr.mxu0 0.0
    %1575 = vmatpush2.msra.mxu0 0.0
    %1576 = vmatprep.subr.mxu0 0.0
    %1577 = vmatpush2.msra.mxu0 0.0
    %1578 = vmatprep.subr.mxu0 0.0
    %1579 = vmatpush2.msra.mxu0 0.0
    %1580 = vmatprep.subr.mxu0 0.0
    %1581 = vmatpush2.msra.mxu0 0.0
    %1582 = vmatprep.subr.mxu0 0.0
    %1583 = vmatpush2.msra.mxu0 0.0
    %1584 = vmatprep.mubr.f32.mxu0 0.0
    %1585 = vmatmul.mubr.f32.gmra.mxu0 %v999
    %v1586 = vpop.f32.mrf.mxu0
    %v1587 = vadd.f32 %v1518, %v1586
    %v1588 = vpop.f32.mrf.mxu0
    %1589 = vdwg.mxu0
    %1590 = vst.msk [vmem:[#allocation2] sm:$0xff] %vm152, %v1587
    // Predicated region
    $region70: #{tpu_custom_call.1} parent=1 // pred_check
      _
    $region71: #{tpu_custom_call.1} parent=1 // pred_check_branch
      %1592 = sbr.rel (0) target = $region73
    $region72: #{tpu_custom_call.1} parent=1 // pred_region
      %s1594 = ssub.s32 128, 128
      %1595 = vsyncadd [#allocation3], %s1594
      %s1597 = sshll.u32 [#allocation2], 4
      %s1598 = int_to_ptr.vmem [resolvable:$true] %s1597
      %1600 = dma.vmem_to_hbm [thread:$0]  %s1598, 128, %s17, [#allocation3]
    $region73: #{tpu_custom_call.1} parent=1 // pred_fallthru
      _
    // Predicated region
    $region74: #{tpu_custom_call.1} parent=1 // pred_check
      _
    $region75: #{tpu_custom_call.1} parent=1 // pred_check_branch
      %1602 = sbr.rel (0) target = $region77
    $region76: #{tpu_custom_call.1} parent=1 // pred_region
      %1603 = dma.done [#allocation3], 128
    $region77: #{tpu_custom_call.1} parent=1 // pred_fallthru
      _
    %1604 = vsyncpa [#allocation3], 1

</llo_original>
